<compile_context>
chip_gen: v6e
topology: v6e:2x2x1
jax: 0.10.0
libtpu: 0.0.40
codegen_flags: <defaults>
</compile_context>

<pallas_src>
import functools

import numpy as np
import jax
import jax.numpy as jnp
from jax import lax
from jax.experimental import pallas as pl
from jax.experimental.pallas import tpu as pltpu

# ----- model hyper-parameters (standard Mamba defaults, small d_model) -------
D_MODEL = 32
D_STATE = 16
D_CONV  = 4
EXPAND  = 2
D_INNER = EXPAND * D_MODEL                    # 64
DT_RANK = max(1, (D_MODEL + 15) // 16)        # ceil(d_model / 16) = 2
LN_EPS  = 1e-5


def _softplus(x):
    # numerically stable softplus
    return jnp.maximum(x, 0.0) + jnp.log(1.0 + jnp.exp(-jnp.abs(x)))


def _silu(x):
    return x * (1.0 / (1.0 + jnp.exp(-x)))


def mamba_layer_kernel(lc,
                       x_ref, w_in_ref, w_conv_ref, b_conv_ref, w_f_ref,
                       b_dt_ref, a_row_ref, q_ref, p_ref, d_ref, w_out_ref,
                       gamma_ref, beta_ref,
                       o_ref,
                       halo_scr, h_scr):
    Lc = lc
    E, N, K = D_INNER, D_STATE, D_CONV
    NE = N * E
    f32, bf16 = jnp.float32, jnp.bfloat16

    ic = pl.program_id(1)          # time-chunk index (serial, "arbitrary")

    # reset the carried state at the first chunk of every batch element
    @pl.when(ic == 0)
    def _():
        halo_scr[...] = jnp.zeros((K - 1, E), f32)
        h_scr[...] = jnp.zeros((1, NE), f32)

    x = x_ref[...]                                                  # (Lc, D)

    # ---- fused in_proj (bf16 MXU, f32 accumulate): x -> [x_in | z] ----------
    xz = jnp.dot(x.astype(bf16), w_in_ref[...],
                 preferred_element_type=f32)                        # (Lc, 2E)
    x_in = xz[:, :E]                                                # (Lc, E)
    z    = xz[:, E:]                                                # (Lc, E)

    # ---- depthwise causal conv1d: (K-1)-row halo carried across chunks ------
    ext = jnp.concatenate([halo_scr[...], x_in], axis=0)            # (Lc+K-1, E)
    wc = w_conv_ref[...]                                            # (K, E)
    conv = ext[0:Lc, :] * wc[0:1, :]
    for k in range(1, K):                                           # K = 4
        conv = conv + ext[k:k + Lc, :] * wc[k:k + 1, :]
    conv = conv + b_conv_ref[...]
    xc = _silu(conv)                                                # (Lc, E)
    halo_scr[...] = ext[Lc:Lc + K - 1, :]        # last K-1 inputs -> next chunk

    # ---- fused x_proj + dt_proj -> [delta_pre | B | C] -----------------------
    dbc = jnp.dot(xc.astype(bf16), w_f_ref[...],
                  preferred_element_type=f32)                       # (Lc, E+2N)
    delta = _softplus(dbc[:, :E] + b_dt_ref[...])                   # (Lc, E)
    Bm = dbc[:, E:E + N]                                            # (Lc, N)
    Cm = dbc[:, E + N:E + 2 * N]                                    # (Lc, N)
    dtx = delta * xc                                                # (Lc, E)

    # ---- expand to the lane-dense scan layout (lane = n*E + e) --------------
    # Q (E, NE) tiles over n, P (N, NE) repeats over e; both tiny, O(1) in L.
    delta_t = jnp.dot(delta, q_ref[...], preferred_element_type=f32)  # (Lc, NE)
    dtx_t   = jnp.dot(dtx,   q_ref[...], preferred_element_type=f32)  # (Lc, NE)
    b_rep   = jnp.dot(Bm,    p_ref[...], preferred_element_type=f32)  # (Lc, NE)

    decay = jnp.exp(delta_t * a_row_ref[...])                       # exp(dt*A)
    dbx   = dtx_t * b_rep                                           # dt*x*B

    # ---- associative (Hillis-Steele) scan over time within the chunk --------
    #   h_t = decay_t * h_{t-1} + dbx_t   (per (n,e) lane, fully vectorized)
    a_sc, b_sc = decay, dbx
    off = 1
    while off < Lc:
        a_sh = jnp.concatenate(
            [jnp.ones((off, NE), f32), a_sc[:Lc - off, :]], axis=0)
        b_sh = jnp.concatenate(
            [jnp.zeros((off, NE), f32), b_sc[:Lc - off, :]], axis=0)
        b_sc = a_sc * b_sh + b_sc
        a_sc = a_sc * a_sh
        off *= 2

    h_prev = h_scr[...]                                             # (1, NE)
    H = a_sc * h_prev + b_sc                                        # (Lc, NE)
    h_scr[...] = H[Lc - 1:Lc, :]                 # carry state to the next chunk

    # ---- y_t[e] = sum_n C[t,n] * h[t,e,n]  (C folded at the point of use) ---
    y = xc * d_ref[...]                                             # D-skip
    for n in range(N):                                              # N = 16
        y = y + Cm[:, n:n + 1] * H[:, n * E:(n + 1) * E]

    # ---- gate, out_proj, residual + LayerNorm --------------------------------
    y = y * _silu(z)
    mamba_out = jnp.dot(y.astype(bf16), w_out_ref[...],
                        preferred_element_type=f32)                 # (Lc, D)

    res = x + mamba_out
    mean = jnp.mean(res, axis=1, keepdims=True)
    cen = res - mean
    var = jnp.mean(cen * cen, axis=1, keepdims=True)
    normed = cen * lax.rsqrt(var + LN_EPS)
    # TODO(synk): pack 4 time rows per 128-lane output row to make this store
    # lane-dense (D=32); output bytes are a small fraction of the scan work.
    o_ref[...] = (normed * gamma_ref[...] + beta_ref[...]).astype(o_ref.dtype)


def make_params(key):
    """Deterministic synthetic parameters (PyTorch layouts: Linear = (out, in))."""
    D, E, N, K, R = D_MODEL, D_INNER, D_STATE, D_CONV, DT_RANK
    ks = jax.random.split(key, 6)
    s = 0.05
    p = {}
    p["w_in"]   = jax.random.normal(ks[0], (2 * E, D), jnp.float32) * s   # in_proj
    p["w_conv"] = jax.random.normal(ks[1], (E, K), jnp.float32) * s       # conv1d (E,1,K) squeezed
    p["b_conv"] = jax.random.normal(ks[2], (E,), jnp.float32) * s
    p["w_xp"]   = jax.random.normal(ks[3], (R + 2 * N, E), jnp.float32) * s  # x_proj
    p["w_dt"]   = jax.random.normal(ks[4], (E, R), jnp.float32) * s          # dt_proj
    p["b_dt"]   = jnp.full((E,), float(jnp.log(jnp.expm1(0.01))), jnp.float32)
    p["a_log"]  = jnp.log(jnp.broadcast_to(
        jnp.arange(1, N + 1, dtype=jnp.float32), (E, N)))
    p["d"]      = jnp.ones((E,), jnp.float32)
    p["w_out"]  = jax.random.normal(ks[5], (D, E), jnp.float32) * s          # out_proj
    p["gamma"]  = jnp.ones((D_MODEL,), jnp.float32)                          # LayerNorm init
    p["beta"]   = jnp.zeros((D_MODEL,), jnp.float32)
    return p


def mamba_layer_forward(x, p):
    B, L, D = x.shape
    assert D == D_MODEL
    E, N, K, R = D_INNER, D_STATE, D_CONV, DT_RANK
    NE = N * E
    f32, bf16 = jnp.float32, jnp.bfloat16

    # time chunk: largest divisor of L that is <= 128; all per-chunk scratch
    # and values are O(Lc), independent of total sequence length.
    Lc = 1
    for cand in range(min(L, 128), 0, -1):
        if L % cand == 0:
            Lc = cand
            break
    nc = L // Lc

    # ---- glue: kernel-friendly weight layouts (Linear weight is (out, in)) ---
    w_in = p["w_in"].T.astype(bf16)                               # (D, 2E)
    w_conv = p["w_conv"].T.astype(f32)                            # (K, E)
    b_conv = p["b_conv"][None, :].astype(f32)                     # (1, E)
    # dt_proj fused into x_proj: delta_pre = xc @ (Wxp_dt @ Wdt^T) + b_dt
    w_xp_t = p["w_xp"].T                                          # (E, R+2N)
    w_delta = w_xp_t[:, :R] @ p["w_dt"].T                         # (E, E)
    w_f = jnp.concatenate([w_delta, w_xp_t[:, R:]], axis=1).astype(bf16)  # (E, E+2N)
    b_dt = p["b_dt"][None, :].astype(f32)                         # (1, E)
    # A = -exp(A_log) in the (n*E + e) lane layout -- O(1) in L (4 KiB)
    a_row = (-jnp.exp(p["a_log"])).T.reshape(1, NE).astype(f32)   # (1, NE)
    d_vec = p["d"][None, :].astype(f32)                           # (1, E)
    w_out = p["w_out"].T.astype(bf16)                             # (E, D)
    gamma = p["gamma"][None, :].astype(f32)                       # (1, D)
    beta = p["beta"][None, :].astype(f32)                         # (1, D)

    # tiny constant expanders (O(N*E^2) bytes, independent of L):
    #   Q[e, n*E + e] = 1   -> tiles delta/dtx across the n groups
    #   P[n, n*E + e] = 1   -> repeats B across the e lanes of each group
    q_mat = jnp.asarray(np.tile(np.eye(E, dtype=np.float32), (1, N)))        # (E, NE)
    p_mat = jnp.asarray(np.repeat(np.eye(N, dtype=np.float32), E, axis=1))   # (N, NE)

    x2d = x.reshape(B * L, D)

    weights = [w_in, w_conv, b_conv, w_f, b_dt, a_row, q_mat, p_mat,
               d_vec, w_out, gamma, beta]

    def wspec(a):
        nd = a.ndim
        # TODO(synk): mark these constant-index weights pipeline_mode=
        # pl.Buffered(1) once single-buffering is guaranteed everywhere;
        # they total < 1 MiB here so double-buffering is harmless.
        return pl.BlockSpec(a.shape, lambda b, c, _nd=nd: (0,) * _nd)

    in_specs = ([pl.BlockSpec((Lc, D), lambda b, c: (b * nc + c, 0))]
                + [wspec(w) for w in weights])

    kern = functools.partial(mamba_layer_kernel, Lc)

    out2d = pl.pallas_call(
        kern,
        out_shape=jax.ShapeDtypeStruct((B * L, D), x.dtype),
        grid_spec=pltpu.PrefetchScalarGridSpec(
            num_scalar_prefetch=0,
            grid=(B, nc),
            in_specs=in_specs,
            out_specs=pl.BlockSpec((Lc, D), lambda b, c: (b * nc + c, 0)),
            scratch_shapes=[
                pltpu.VMEM((D_CONV - 1, E), jnp.float32),   # conv halo (carried)
                pltpu.VMEM((1, NE), jnp.float32),           # scan state (carried)
            ],
        ),
        compiler_params=pltpu.CompilerParams(
            dimension_semantics=("parallel", "arbitrary"),
            vmem_limit_bytes=32 * 1024 * 1024),
    )(x2d, *weights)

    return out2d.reshape(B, L, D)


if __name__ == "__main__":
    B, L, D = 2, 8, D_MODEL
    key = jax.random.PRNGKey(0)
    k_x, k_p = jax.random.split(key)
    x = jax.random.normal(k_x, (B, L, D), jnp.float32)
    params = make_params(k_p)

    out = mamba_layer_forward(x, params)
    out = jax.block_until_ready(out)
    assert out.shape == (B, L, D) and out.dtype == jnp.float32
    assert bool(jnp.all(jnp.isfinite(out)))
    print("KERNEL_OK")
</pallas_src>

<mosaic_0001>
module attributes {stable_mosaic.version = 11 : i64} {
  func.func @mamba_layer_kernel(%arg0: i32, %arg1: i32, %arg2: memref<8x32xf32, #tpu.memory_space<vmem>>, %arg3: memref<32x128xbf16, #tpu.memory_space<vmem>>, %arg4: memref<4x64xf32, #tpu.memory_space<vmem>>, %arg5: memref<1x64xf32, #tpu.memory_space<vmem>>, %arg6: memref<64x96xbf16, #tpu.memory_space<vmem>>, %arg7: memref<1x64xf32, #tpu.memory_space<vmem>>, %arg8: memref<1x1024xf32, #tpu.memory_space<vmem>>, %arg9: memref<64x1024xf32, #tpu.memory_space<vmem>>, %arg10: memref<16x1024xf32, #tpu.memory_space<vmem>>, %arg11: memref<1x64xf32, #tpu.memory_space<vmem>>, %arg12: memref<64x32xbf16, #tpu.memory_space<vmem>>, %arg13: memref<1x32xf32, #tpu.memory_space<vmem>>, %arg14: memref<1x32xf32, #tpu.memory_space<vmem>>, %arg15: memref<8x32xf32, #tpu.memory_space<vmem>>, %arg16: memref<3x64xf32, #tpu.memory_space<vmem>>, %arg17: memref<1x1024xf32, #tpu.memory_space<vmem>>) attributes {dimension_semantics = [#tpu.dimension_semantics<parallel>, #tpu.dimension_semantics<arbitrary>], iteration_bounds = array<i64: 2, 1>, scalar_prefetch = 0 : i64, scratch_operands = 2 : i64, tpu.core_type = #tpu.core_type<tc>, window_params = [{transform_indices = @transform_0, window_bounds = array<i64: 8, 32>}, {pipeline_mode = #tpu.pipeline_mode<synchronous>, transform_indices = @transform_1, window_bounds = array<i64: 32, 128>}, {pipeline_mode = #tpu.pipeline_mode<synchronous>, transform_indices = @transform_2, window_bounds = array<i64: 4, 64>}, {pipeline_mode = #tpu.pipeline_mode<synchronous>, transform_indices = @transform_3, window_bounds = array<i64: 1, 64>}, {pipeline_mode = #tpu.pipeline_mode<synchronous>, transform_indices = @transform_4, window_bounds = array<i64: 64, 96>}, {pipeline_mode = #tpu.pipeline_mode<synchronous>, transform_indices = @transform_5, window_bounds = array<i64: 1, 64>}, {pipeline_mode = #tpu.pipeline_mode<synchronous>, transform_indices = @transform_6, window_bounds = array<i64: 1, 1024>}, {pipeline_mode = #tpu.pipeline_mode<synchronous>, transform_indices = @transform_7, window_bounds = array<i64: 64, 1024>}, {pipeline_mode = #tpu.pipeline_mode<synchronous>, transform_indices = @transform_8, window_bounds = array<i64: 16, 1024>}, {pipeline_mode = #tpu.pipeline_mode<synchronous>, transform_indices = @transform_9, window_bounds = array<i64: 1, 64>}, {pipeline_mode = #tpu.pipeline_mode<synchronous>, transform_indices = @transform_10, window_bounds = array<i64: 64, 32>}, {pipeline_mode = #tpu.pipeline_mode<synchronous>, transform_indices = @transform_11, window_bounds = array<i64: 1, 32>}, {pipeline_mode = #tpu.pipeline_mode<synchronous>, transform_indices = @transform_12, window_bounds = array<i64: 1, 32>}, {transform_indices = @transform_13, window_bounds = array<i64: 8, 32>}]} {
    %c0_i32 = arith.constant 0 : i32
    %0 = arith.cmpi eq, %arg1, %c0_i32 : i32
    %1 = arith.extui %0 : i1 to i32
    %c0_i32_0 = arith.constant 0 : i32
    %2 = arith.cmpi ne, %1, %c0_i32_0 : i32
    scf.if %2 {
      %cst_63 = arith.constant 0.000000e+00 : f32
      %227 = vector.broadcast %cst_63 : f32 to vector<3x64xf32>
      %c0_64 = arith.constant 0 : index
      %c0_65 = arith.constant 0 : index
      %228 = vector.load %arg16[%c0_64, %c0_65] : memref<3x64xf32, #tpu.memory_space<vmem>>, vector<3x64xf32>
      tpu.vector_store %arg16[%c0_64, %c0_65], %227 {strides = array<i32>} : memref<3x64xf32, #tpu.memory_space<vmem>>, vector<3x64xf32>,
      %cst_66 = arith.constant 0.000000e+00 : f32
      %229 = vector.broadcast %cst_66 : f32 to vector<1x1024xf32>
      %c0_67 = arith.constant 0 : index
      %c0_68 = arith.constant 0 : index
      %230 = vector.load %arg17[%c0_67, %c0_68] : memref<1x1024xf32, #tpu.memory_space<vmem>>, vector<1x1024xf32>
      tpu.vector_store %arg17[%c0_67, %c0_68], %229 {strides = array<i32>} : memref<1x1024xf32, #tpu.memory_space<vmem>>, vector<1x1024xf32>,
    } else {
    }
    %c0 = arith.constant 0 : index
    %c0_1 = arith.constant 0 : index
    %3 = vector.load %arg2[%c0, %c0_1] : memref<8x32xf32, #tpu.memory_space<vmem>>, vector<8x32xf32>
    %4 = arith.truncf %3 : vector<8x32xf32> to vector<8x32xbf16>
    %c0_2 = arith.constant 0 : index
    %c0_3 = arith.constant 0 : index
    %5 = vector.load %arg3[%c0_2, %c0_3] : memref<32x128xbf16, #tpu.memory_space<vmem>>, vector<32x128xbf16>
    %cst = arith.constant dense<0.000000e+00> : vector<8x128xf32>
    %6 = tpu.matmul %4, %5, %cst {dimension_numbers = #tpu.dot_dimension_numbers<[1], [0], [0], [1], [0, 0, 1, 1], [], []>} : vector<8x32xbf16>, vector<32x128xbf16>, vector<8x128xf32> -> vector<8x128xf32>
    %7 = vector.extract_strided_slice %6 {offsets = [0, 0], sizes = [8, 64], strides = [1, 1]} : vector<8x128xf32> to vector<8x64xf32>
    %8 = vector.extract_strided_slice %6 {offsets = [0, 64], sizes = [8, 64], strides = [1, 1]} : vector<8x128xf32> to vector<8x64xf32>
    %c0_4 = arith.constant 0 : index
    %c0_5 = arith.constant 0 : index
    %9 = vector.load %arg16[%c0_4, %c0_5] : memref<3x64xf32, #tpu.memory_space<vmem>>, vector<3x64xf32>
    %10 = tpu.concatenate %9, %7 in 0 : vector<3x64xf32>, vector<8x64xf32> -> vector<11x64xf32>
    %c0_6 = arith.constant 0 : index
    %c0_7 = arith.constant 0 : index
    %11 = vector.load %arg4[%c0_6, %c0_7] : memref<4x64xf32, #tpu.memory_space<vmem>>, vector<4x64xf32>
    %12 = vector.extract_strided_slice %10 {offsets = [0, 0], sizes = [8, 64], strides = [1, 1]} : vector<11x64xf32> to vector<8x64xf32>
    %13 = vector.extract_strided_slice %11 {offsets = [0, 0], sizes = [1, 64], strides = [1, 1]} : vector<4x64xf32> to vector<1x64xf32>
    %14 = vector.broadcast %13 : vector<1x64xf32> to vector<8x64xf32>
    %15 = arith.mulf %12, %14 : vector<8x64xf32>
    %16 = vector.extract_strided_slice %10 {offsets = [1, 0], sizes = [8, 64], strides = [1, 1]} : vector<11x64xf32> to vector<8x64xf32>
    %17 = vector.extract_strided_slice %11 {offsets = [1, 0], sizes = [1, 64], strides = [1, 1]} : vector<4x64xf32> to vector<1x64xf32>
    %18 = vector.broadcast %17 : vector<1x64xf32> to vector<8x64xf32>
    %19 = arith.mulf %16, %18 : vector<8x64xf32>
    %20 = arith.addf %15, %19 : vector<8x64xf32>
    %21 = vector.extract_strided_slice %10 {offsets = [2, 0], sizes = [8, 64], strides = [1, 1]} : vector<11x64xf32> to vector<8x64xf32>
    %22 = vector.extract_strided_slice %11 {offsets = [2, 0], sizes = [1, 64], strides = [1, 1]} : vector<4x64xf32> to vector<1x64xf32>
    %23 = vector.broadcast %22 : vector<1x64xf32> to vector<8x64xf32>
    %24 = arith.mulf %21, %23 : vector<8x64xf32>
    %25 = arith.addf %20, %24 : vector<8x64xf32>
    %26 = vector.extract_strided_slice %10 {offsets = [3, 0], sizes = [8, 64], strides = [1, 1]} : vector<11x64xf32> to vector<8x64xf32>
    %27 = vector.extract_strided_slice %11 {offsets = [3, 0], sizes = [1, 64], strides = [1, 1]} : vector<4x64xf32> to vector<1x64xf32>
    %28 = vector.broadcast %27 : vector<1x64xf32> to vector<8x64xf32>
    %29 = arith.mulf %26, %28 : vector<8x64xf32>
    %30 = arith.addf %25, %29 : vector<8x64xf32>
    %c0_8 = arith.constant 0 : index
    %c0_9 = arith.constant 0 : index
    %31 = vector.load %arg5[%c0_8, %c0_9] : memref<1x64xf32, #tpu.memory_space<vmem>>, vector<1x64xf32>
    %32 = vector.broadcast %31 : vector<1x64xf32> to vector<8x64xf32>
    %33 = arith.addf %30, %32 : vector<8x64xf32>
    %cst_10 = arith.constant 0.000000e+00 : f32
    %34 = vector.broadcast %cst_10 : f32 to vector<8x64xf32>
    %35 = arith.subf %34, %33 : vector<8x64xf32>
    %36 = math.exp %35 : vector<8x64xf32>
    %cst_11 = arith.constant 1.000000e+00 : f32
    %37 = vector.broadcast %cst_11 : f32 to vector<8x64xf32>
    %38 = arith.addf %37, %36 : vector<8x64xf32>
    %cst_12 = arith.constant 1.000000e+00 : f32
    %39 = vector.broadcast %cst_12 : f32 to vector<8x64xf32>
    %40 = arith.divf %39, %38 : vector<8x64xf32>
    %41 = arith.mulf %33, %40 : vector<8x64xf32>
    %42 = vector.extract_strided_slice %10 {offsets = [8, 0], sizes = [3, 64], strides = [1, 1]} : vector<11x64xf32> to vector<3x64xf32>
    %c0_13 = arith.constant 0 : index
    %c0_14 = arith.constant 0 : index
    %43 = vector.load %arg16[%c0_13, %c0_14] : memref<3x64xf32, #tpu.memory_space<vmem>>, vector<3x64xf32>
    tpu.vector_store %arg16[%c0_13, %c0_14], %42 {strides = array<i32>} : memref<3x64xf32, #tpu.memory_space<vmem>>, vector<3x64xf32>,
    %44 = arith.truncf %41 : vector<8x64xf32> to vector<8x64xbf16>
    %c0_15 = arith.constant 0 : index
    %c0_16 = arith.constant 0 : index
    %45 = vector.load %arg6[%c0_15, %c0_16] : memref<64x96xbf16, #tpu.memory_space<vmem>>, vector<64x96xbf16>
    %cst_17 = arith.constant dense<0.000000e+00> : vector<8x96xf32>
    %46 = tpu.matmul %44, %45, %cst_17 {dimension_numbers = #tpu.dot_dimension_numbers<[1], [0], [0], [1], [0, 0, 1, 1], [], []>} : vector<8x64xbf16>, vector<64x96xbf16>, vector<8x96xf32> -> vector<8x96xf32>
    %47 = vector.extract_strided_slice %46 {offsets = [0, 0], sizes = [8, 64], strides = [1, 1]} : vector<8x96xf32> to vector<8x64xf32>
    %c0_18 = arith.constant 0 : index
    %c0_19 = arith.constant 0 : index
    %48 = vector.load %arg7[%c0_18, %c0_19] : memref<1x64xf32, #tpu.memory_space<vmem>>, vector<1x64xf32>
    %49 = vector.broadcast %48 : vector<1x64xf32> to vector<8x64xf32>
    %50 = arith.addf %47, %49 : vector<8x64xf32>
    %cst_20 = arith.constant 0.000000e+00 : f32
    %51 = vector.broadcast %cst_20 : f32 to vector<8x64xf32>
    %52 = arith.maximumf %50, %51 : vector<8x64xf32>
    %53 = math.absf %50 : vector<8x64xf32>
    %cst_21 = arith.constant 0.000000e+00 : f32
    %54 = vector.broadcast %cst_21 : f32 to vector<8x64xf32>
    %55 = arith.subf %54, %53 : vector<8x64xf32>
    %56 = math.exp %55 : vector<8x64xf32>
    %cst_22 = arith.constant 1.000000e+00 : f32
    %57 = vector.broadcast %cst_22 : f32 to vector<8x64xf32>
    %58 = arith.addf %57, %56 : vector<8x64xf32>
    %59 = math.log %58 : vector<8x64xf32>
    %60 = arith.addf %52, %59 : vector<8x64xf32>
    %61 = vector.extract_strided_slice %46 {offsets = [0, 64], sizes = [8, 16], strides = [1, 1]} : vector<8x96xf32> to vector<8x16xf32>
    %62 = vector.extract_strided_slice %46 {offsets = [0, 80], sizes = [8, 16], strides = [1, 1]} : vector<8x96xf32> to vector<8x16xf32>
    %63 = arith.mulf %60, %41 : vector<8x64xf32>
    %c0_23 = arith.constant 0 : index
    %c0_24 = arith.constant 0 : index
    %64 = vector.load %arg9[%c0_23, %c0_24] : memref<64x1024xf32, #tpu.memory_space<vmem>>, vector<64x1024xf32>
    %cst_25 = arith.constant dense<0.000000e+00> : vector<8x1024xf32>
    %65 = tpu.matmul %60, %64, %cst_25 {dimension_numbers = #tpu.dot_dimension_numbers<[1], [0], [0], [1], [0, 0, 1, 1], [], []>} : vector<8x64xf32>, vector<64x1024xf32>, vector<8x1024xf32> -> vector<8x1024xf32>
    %c0_26 = arith.constant 0 : index
    %c0_27 = arith.constant 0 : index
    %66 = vector.load %arg9[%c0_26, %c0_27] : memref<64x1024xf32, #tpu.memory_space<vmem>>, vector<64x1024xf32>
    %cst_28 = arith.constant dense<0.000000e+00> : vector<8x1024xf32>
    %67 = tpu.matmul %63, %66, %cst_28 {dimension_numbers = #tpu.dot_dimension_numbers<[1], [0], [0], [1], [0, 0, 1, 1], [], []>} : vector<8x64xf32>, vector<64x1024xf32>, vector<8x1024xf32> -> vector<8x1024xf32>
    %c0_29 = arith.constant 0 : index
    %c0_30 = arith.constant 0 : index
    %68 = vector.load %arg10[%c0_29, %c0_30] : memref<16x1024xf32, #tpu.memory_space<vmem>>, vector<16x1024xf32>
    %cst_31 = arith.constant dense<0.000000e+00> : vector<8x1024xf32>
    %69 = tpu.matmul %61, %68, %cst_31 {dimension_numbers = #tpu.dot_dimension_numbers<[1], [0], [0], [1], [0, 0, 1, 1], [], []>} : vector<8x16xf32>, vector<16x1024xf32>, vector<8x1024xf32> -> vector<8x1024xf32>
    %c0_32 = arith.constant 0 : index
    %c0_33 = arith.constant 0 : index
    %70 = vector.load %arg8[%c0_32, %c0_33] : memref<1x1024xf32, #tpu.memory_space<vmem>>, vector<1x1024xf32>
    %71 = vector.broadcast %70 : vector<1x1024xf32> to vector<8x1024xf32>
    %72 = arith.mulf %65, %71 : vector<8x1024xf32>
    %73 = math.exp %72 : vector<8x1024xf32>
    %74 = arith.mulf %67, %69 : vector<8x1024xf32>
    %cst_34 = arith.constant 1.000000e+00 : f32
    %75 = vector.broadcast %cst_34 : f32 to vector<1x1024xf32>
    %76 = vector.extract_strided_slice %73 {offsets = [0, 0], sizes = [7, 1024], strides = [1, 1]} : vector<8x1024xf32> to vector<7x1024xf32>
    %77 = tpu.concatenate %75, %76 in 0 : vector<1x1024xf32>, vector<7x1024xf32> -> vector<8x1024xf32>
    %cst_35 = arith.constant 0.000000e+00 : f32
    %78 = vector.broadcast %cst_35 : f32 to vector<1x1024xf32>
    %79 = vector.extract_strided_slice %74 {offsets = [0, 0], sizes = [7, 1024], strides = [1, 1]} : vector<8x1024xf32> to vector<7x1024xf32>
    %80 = tpu.concatenate %78, %79 in 0 : vector<1x1024xf32>, vector<7x1024xf32> -> vector<8x1024xf32>
    %81 = arith.mulf %73, %80 : vector<8x1024xf32>
    %82 = arith.addf %81, %74 : vector<8x1024xf32>
    %83 = arith.mulf %73, %77 : vector<8x1024xf32>
    %cst_36 = arith.constant 1.000000e+00 : f32
    %84 = vector.broadcast %cst_36 : f32 to vector<2x1024xf32>
    %85 = vector.extract_strided_slice %83 {offsets = [0, 0], sizes = [6, 1024], strides = [1, 1]} : vector<8x1024xf32> to vector<6x1024xf32>
    %86 = tpu.concatenate %84, %85 in 0 : vector<2x1024xf32>, vector<6x1024xf32> -> vector<8x1024xf32>
    %cst_37 = arith.constant 0.000000e+00 : f32
    %87 = vector.broadcast %cst_37 : f32 to vector<2x1024xf32>
    %88 = vector.extract_strided_slice %82 {offsets = [0, 0], sizes = [6, 1024], strides = [1, 1]} : vector<8x1024xf32> to vector<6x1024xf32>
    %89 = tpu.concatenate %87, %88 in 0 : vector<2x1024xf32>, vector<6x1024xf32> -> vector<8x1024xf32>
    %90 = arith.mulf %83, %89 : vector<8x1024xf32>
    %91 = arith.addf %90, %82 : vector<8x1024xf32>
    %92 = arith.mulf %83, %86 : vector<8x1024xf32>
    %cst_38 = arith.constant 1.000000e+00 : f32
    %93 = vector.broadcast %cst_38 : f32 to vector<4x1024xf32>
    %94 = vector.extract_strided_slice %92 {offsets = [0, 0], sizes = [4, 1024], strides = [1, 1]} : vector<8x1024xf32> to vector<4x1024xf32>
    %95 = tpu.concatenate %93, %94 in 0 : vector<4x1024xf32>, vector<4x1024xf32> -> vector<8x1024xf32>
    %cst_39 = arith.constant 0.000000e+00 : f32
    %96 = vector.broadcast %cst_39 : f32 to vector<4x1024xf32>
    %97 = vector.extract_strided_slice %91 {offsets = [0, 0], sizes = [4, 1024], strides = [1, 1]} : vector<8x1024xf32> to vector<4x1024xf32>
    %98 = tpu.concatenate %96, %97 in 0 : vector<4x1024xf32>, vector<4x1024xf32> -> vector<8x1024xf32>
    %99 = arith.mulf %92, %98 : vector<8x1024xf32>
    %100 = arith.addf %99, %91 : vector<8x1024xf32>
    %101 = arith.mulf %92, %95 : vector<8x1024xf32>
    %c0_40 = arith.constant 0 : index
    %c0_41 = arith.constant 0 : index
    %102 = vector.load %arg17[%c0_40, %c0_41] : memref<1x1024xf32, #tpu.memory_space<vmem>>, vector<1x1024xf32>
    %103 = vector.broadcast %102 : vector<1x1024xf32> to vector<8x1024xf32>
    %104 = arith.mulf %101, %103 : vector<8x1024xf32>
    %105 = arith.addf %104, %100 : vector<8x1024xf32>
    %106 = vector.extract_strided_slice %105 {offsets = [7, 0], sizes = [1, 1024], strides = [1, 1]} : vector<8x1024xf32> to vector<1x1024xf32>
    %c0_42 = arith.constant 0 : index
    %c0_43 = arith.constant 0 : index
    %107 = vector.load %arg17[%c0_42, %c0_43] : memref<1x1024xf32, #tpu.memory_space<vmem>>, vector<1x1024xf32>
    tpu.vector_store %arg17[%c0_42, %c0_43], %106 {strides = array<i32>} : memref<1x1024xf32, #tpu.memory_space<vmem>>, vector<1x1024xf32>,
    %c0_44 = arith.constant 0 : index
    %c0_45 = arith.constant 0 : index
    %108 = vector.load %arg11[%c0_44, %c0_45] : memref<1x64xf32, #tpu.memory_space<vmem>>, vector<1x64xf32>
    %109 = vector.broadcast %108 : vector<1x64xf32> to vector<8x64xf32>
    %110 = arith.mulf %41, %109 : vector<8x64xf32>
    %111 = vector.extract_strided_slice %62 {offsets = [0, 0], sizes = [8, 1], strides = [1, 1]} : vector<8x16xf32> to vector<8x1xf32>
    %112 = vector.extract_strided_slice %105 {offsets = [0, 0], sizes = [8, 64], strides = [1, 1]} : vector<8x1024xf32> to vector<8x64xf32>
    %113 = vector.broadcast %111 : vector<8x1xf32> to vector<8x64xf32>
    %114 = arith.mulf %113, %112 : vector<8x64xf32>
    %115 = arith.addf %110, %114 : vector<8x64xf32>
    %116 = vector.extract_strided_slice %62 {offsets = [0, 1], sizes = [8, 1], strides = [1, 1]} : vector<8x16xf32> to vector<8x1xf32>
    %117 = vector.extract_strided_slice %105 {offsets = [0, 64], sizes = [8, 64], strides = [1, 1]} : vector<8x1024xf32> to vector<8x64xf32>
    %118 = vector.broadcast %116 : vector<8x1xf32> to vector<8x64xf32>
    %119 = arith.mulf %118, %117 : vector<8x64xf32>
    %120 = arith.addf %115, %119 : vector<8x64xf32>
    %121 = vector.extract_strided_slice %62 {offsets = [0, 2], sizes = [8, 1], strides = [1, 1]} : vector<8x16xf32> to vector<8x1xf32>
    %122 = vector.extract_strided_slice %105 {offsets = [0, 128], sizes = [8, 64], strides = [1, 1]} : vector<8x1024xf32> to vector<8x64xf32>
    %123 = vector.broadcast %121 : vector<8x1xf32> to vector<8x64xf32>
    %124 = arith.mulf %123, %122 : vector<8x64xf32>
    %125 = arith.addf %120, %124 : vector<8x64xf32>
    %126 = vector.extract_strided_slice %62 {offsets = [0, 3], sizes = [8, 1], strides = [1, 1]} : vector<8x16xf32> to vector<8x1xf32>
    %127 = vector.extract_strided_slice %105 {offsets = [0, 192], sizes = [8, 64], strides = [1, 1]} : vector<8x1024xf32> to vector<8x64xf32>
    %128 = vector.broadcast %126 : vector<8x1xf32> to vector<8x64xf32>
    %129 = arith.mulf %128, %127 : vector<8x64xf32>
    %130 = arith.addf %125, %129 : vector<8x64xf32>
    %131 = vector.extract_strided_slice %62 {offsets = [0, 4], sizes = [8, 1], strides = [1, 1]} : vector<8x16xf32> to vector<8x1xf32>
    %132 = vector.extract_strided_slice %105 {offsets = [0, 256], sizes = [8, 64], strides = [1, 1]} : vector<8x1024xf32> to vector<8x64xf32>
    %133 = vector.broadcast %131 : vector<8x1xf32> to vector<8x64xf32>
    %134 = arith.mulf %133, %132 : vector<8x64xf32>
    %135 = arith.addf %130, %134 : vector<8x64xf32>
    %136 = vector.extract_strided_slice %62 {offsets = [0, 5], sizes = [8, 1], strides = [1, 1]} : vector<8x16xf32> to vector<8x1xf32>
    %137 = vector.extract_strided_slice %105 {offsets = [0, 320], sizes = [8, 64], strides = [1, 1]} : vector<8x1024xf32> to vector<8x64xf32>
    %138 = vector.broadcast %136 : vector<8x1xf32> to vector<8x64xf32>
    %139 = arith.mulf %138, %137 : vector<8x64xf32>
    %140 = arith.addf %135, %139 : vector<8x64xf32>
    %141 = vector.extract_strided_slice %62 {offsets = [0, 6], sizes = [8, 1], strides = [1, 1]} : vector<8x16xf32> to vector<8x1xf32>
    %142 = vector.extract_strided_slice %105 {offsets = [0, 384], sizes = [8, 64], strides = [1, 1]} : vector<8x1024xf32> to vector<8x64xf32>
    %143 = vector.broadcast %141 : vector<8x1xf32> to vector<8x64xf32>
    %144 = arith.mulf %143, %142 : vector<8x64xf32>
    %145 = arith.addf %140, %144 : vector<8x64xf32>
    %146 = vector.extract_strided_slice %62 {offsets = [0, 7], sizes = [8, 1], strides = [1, 1]} : vector<8x16xf32> to vector<8x1xf32>
    %147 = vector.extract_strided_slice %105 {offsets = [0, 448], sizes = [8, 64], strides = [1, 1]} : vector<8x1024xf32> to vector<8x64xf32>
    %148 = vector.broadcast %146 : vector<8x1xf32> to vector<8x64xf32>
    %149 = arith.mulf %148, %147 : vector<8x64xf32>
    %150 = arith.addf %145, %149 : vector<8x64xf32>
    %151 = vector.extract_strided_slice %62 {offsets = [0, 8], sizes = [8, 1], strides = [1, 1]} : vector<8x16xf32> to vector<8x1xf32>
    %152 = vector.extract_strided_slice %105 {offsets = [0, 512], sizes = [8, 64], strides = [1, 1]} : vector<8x1024xf32> to vector<8x64xf32>
    %153 = vector.broadcast %151 : vector<8x1xf32> to vector<8x64xf32>
    %154 = arith.mulf %153, %152 : vector<8x64xf32>
    %155 = arith.addf %150, %154 : vector<8x64xf32>
    %156 = vector.extract_strided_slice %62 {offsets = [0, 9], sizes = [8, 1], strides = [1, 1]} : vector<8x16xf32> to vector<8x1xf32>
    %157 = vector.extract_strided_slice %105 {offsets = [0, 576], sizes = [8, 64], strides = [1, 1]} : vector<8x1024xf32> to vector<8x64xf32>
    %158 = vector.broadcast %156 : vector<8x1xf32> to vector<8x64xf32>
    %159 = arith.mulf %158, %157 : vector<8x64xf32>
    %160 = arith.addf %155, %159 : vector<8x64xf32>
    %161 = vector.extract_strided_slice %62 {offsets = [0, 10], sizes = [8, 1], strides = [1, 1]} : vector<8x16xf32> to vector<8x1xf32>
    %162 = vector.extract_strided_slice %105 {offsets = [0, 640], sizes = [8, 64], strides = [1, 1]} : vector<8x1024xf32> to vector<8x64xf32>
    %163 = vector.broadcast %161 : vector<8x1xf32> to vector<8x64xf32>
    %164 = arith.mulf %163, %162 : vector<8x64xf32>
    %165 = arith.addf %160, %164 : vector<8x64xf32>
    %166 = vector.extract_strided_slice %62 {offsets = [0, 11], sizes = [8, 1], strides = [1, 1]} : vector<8x16xf32> to vector<8x1xf32>
    %167 = vector.extract_strided_slice %105 {offsets = [0, 704], sizes = [8, 64], strides = [1, 1]} : vector<8x1024xf32> to vector<8x64xf32>
    %168 = vector.broadcast %166 : vector<8x1xf32> to vector<8x64xf32>
    %169 = arith.mulf %168, %167 : vector<8x64xf32>
    %170 = arith.addf %165, %169 : vector<8x64xf32>
    %171 = vector.extract_strided_slice %62 {offsets = [0, 12], sizes = [8, 1], strides = [1, 1]} : vector<8x16xf32> to vector<8x1xf32>
    %172 = vector.extract_strided_slice %105 {offsets = [0, 768], sizes = [8, 64], strides = [1, 1]} : vector<8x1024xf32> to vector<8x64xf32>
    %173 = vector.broadcast %171 : vector<8x1xf32> to vector<8x64xf32>
    %174 = arith.mulf %173, %172 : vector<8x64xf32>
    %175 = arith.addf %170, %174 : vector<8x64xf32>
    %176 = vector.extract_strided_slice %62 {offsets = [0, 13], sizes = [8, 1], strides = [1, 1]} : vector<8x16xf32> to vector<8x1xf32>
    %177 = vector.extract_strided_slice %105 {offsets = [0, 832], sizes = [8, 64], strides = [1, 1]} : vector<8x1024xf32> to vector<8x64xf32>
    %178 = vector.broadcast %176 : vector<8x1xf32> to vector<8x64xf32>
    %179 = arith.mulf %178, %177 : vector<8x64xf32>
    %180 = arith.addf %175, %179 : vector<8x64xf32>
    %181 = vector.extract_strided_slice %62 {offsets = [0, 14], sizes = [8, 1], strides = [1, 1]} : vector<8x16xf32> to vector<8x1xf32>
    %182 = vector.extract_strided_slice %105 {offsets = [0, 896], sizes = [8, 64], strides = [1, 1]} : vector<8x1024xf32> to vector<8x64xf32>
    %183 = vector.broadcast %181 : vector<8x1xf32> to vector<8x64xf32>
    %184 = arith.mulf %183, %182 : vector<8x64xf32>
    %185 = arith.addf %180, %184 : vector<8x64xf32>
    %186 = vector.extract_strided_slice %62 {offsets = [0, 15], sizes = [8, 1], strides = [1, 1]} : vector<8x16xf32> to vector<8x1xf32>
    %187 = vector.extract_strided_slice %105 {offsets = [0, 960], sizes = [8, 64], strides = [1, 1]} : vector<8x1024xf32> to vector<8x64xf32>
    %188 = vector.broadcast %186 : vector<8x1xf32> to vector<8x64xf32>
    %189 = arith.mulf %188, %187 : vector<8x64xf32>
    %190 = arith.addf %185, %189 : vector<8x64xf32>
    %cst_46 = arith.constant 0.000000e+00 : f32
    %191 = vector.broadcast %cst_46 : f32 to vector<8x64xf32>
    %192 = arith.subf %191, %8 : vector<8x64xf32>
    %193 = math.exp %192 : vector<8x64xf32>
    %cst_47 = arith.constant 1.000000e+00 : f32
    %194 = vector.broadcast %cst_47 : f32 to vector<8x64xf32>
    %195 = arith.addf %194, %193 : vector<8x64xf32>
    %cst_48 = arith.constant 1.000000e+00 : f32
    %196 = vector.broadcast %cst_48 : f32 to vector<8x64xf32>
    %197 = arith.divf %196, %195 : vector<8x64xf32>
    %198 = arith.mulf %8, %197 : vector<8x64xf32>
    %199 = arith.mulf %190, %198 : vector<8x64xf32>
    %200 = arith.truncf %199 : vector<8x64xf32> to vector<8x64xbf16>
    %c0_49 = arith.constant 0 : index
    %c0_50 = arith.constant 0 : index
    %201 = vector.load %arg12[%c0_49, %c0_50] : memref<64x32xbf16, #tpu.memory_space<vmem>>, vector<64x32xbf16>
    %cst_51 = arith.constant dense<0.000000e+00> : vector<8x32xf32>
    %202 = tpu.matmul %200, %201, %cst_51 {dimension_numbers = #tpu.dot_dimension_numbers<[1], [0], [0], [1], [0, 0, 1, 1], [], []>} : vector<8x64xbf16>, vector<64x32xbf16>, vector<8x32xf32> -> vector<8x32xf32>
    %203 = arith.addf %3, %202 : vector<8x32xf32>
    %cst_52 = arith.constant dense<0.000000e+00> : vector<8xf32>
    %204 = vector.multi_reduction <add>, %203, %cst_52 [1] : vector<8x32xf32> to vector<8xf32>
    %205 = vector.shape_cast %204 : vector<8xf32> to vector<8x1xf32>
    %cst_53 = arith.constant 3.200000e+01 : f32
    %206 = vector.broadcast %cst_53 : f32 to vector<8x1xf32>
    %207 = arith.divf %205, %206 : vector<8x1xf32>
    %208 = vector.broadcast %207 : vector<8x1xf32> to vector<8x32xf32>
    %209 = arith.subf %203, %208 : vector<8x32xf32>
    %210 = arith.mulf %209, %209 : vector<8x32xf32>
    %cst_54 = arith.constant dense<0.000000e+00> : vector<8xf32>
    %211 = vector.multi_reduction <add>, %210, %cst_54 [1] : vector<8x32xf32> to vector<8xf32>
    %212 = vector.shape_cast %211 : vector<8xf32> to vector<8x1xf32>
    %cst_55 = arith.constant 3.200000e+01 : f32
    %213 = vector.broadcast %cst_55 : f32 to vector<8x1xf32>
    %214 = arith.divf %212, %213 : vector<8x1xf32>
    %cst_56 = arith.constant 9.99999974E-6 : f32
    %215 = vector.broadcast %cst_56 : f32 to vector<8x1xf32>
    %216 = arith.addf %214, %215 : vector<8x1xf32>
    %217 = math.rsqrt %216 : vector<8x1xf32>
    %218 = vector.broadcast %217 : vector<8x1xf32> to vector<8x32xf32>
    %219 = arith.mulf %209, %218 : vector<8x32xf32>
    %c0_57 = arith.constant 0 : index
    %c0_58 = arith.constant 0 : index
    %220 = vector.load %arg13[%c0_57, %c0_58] : memref<1x32xf32, #tpu.memory_space<vmem>>, vector<1x32xf32>
    %221 = vector.broadcast %220 : vector<1x32xf32> to vector<8x32xf32>
    %222 = arith.mulf %219, %221 : vector<8x32xf32>
    %c0_59 = arith.constant 0 : index
    %c0_60 = arith.constant 0 : index
    %223 = vector.load %arg14[%c0_59, %c0_60] : memref<1x32xf32, #tpu.memory_space<vmem>>, vector<1x32xf32>
    %224 = vector.broadcast %223 : vector<1x32xf32> to vector<8x32xf32>
    %225 = arith.addf %222, %224 : vector<8x32xf32>
    %c0_61 = arith.constant 0 : index
    %c0_62 = arith.constant 0 : index
    %226 = vector.load %arg15[%c0_61, %c0_62] : memref<8x32xf32, #tpu.memory_space<vmem>>, vector<8x32xf32>
    tpu.vector_store %arg15[%c0_61, %c0_62], %225 {strides = array<i32>} : memref<8x32xf32, #tpu.memory_space<vmem>>, vector<8x32xf32>,
    return
  }
  func.func @transform_0(%arg0: i32, %arg1: i32) -> (i32, i32) {
    %c1_i32 = arith.constant 1 : i32
    %0 = arith.muli %arg0, %c1_i32 : i32
    %1 = arith.addi %0, %arg1 : i32
    %c0_i32 = arith.constant 0 : i32
    %c0_i32_0 = arith.constant 0 : i32
    return %1, %c0_i32 : i32, i32
  }
  func.func @transform_1(%arg0: i32, %arg1: i32) -> (i32, i32) {
    %c0_i32 = arith.constant 0 : i32
    %c0_i32_0 = arith.constant 0 : i32
    %c0_i32_1 = arith.constant 0 : i32
    return %c0_i32, %c0_i32_0 : i32, i32
  }
  func.func @transform_2(%arg0: i32, %arg1: i32) -> (i32, i32) {
    %c0_i32 = arith.constant 0 : i32
    %c0_i32_0 = arith.constant 0 : i32
    %c0_i32_1 = arith.constant 0 : i32
    return %c0_i32, %c0_i32_0 : i32, i32
  }
  func.func @transform_3(%arg0: i32, %arg1: i32) -> (i32, i32) {
    %c0_i32 = arith.constant 0 : i32
    %c0_i32_0 = arith.constant 0 : i32
    %c0_i32_1 = arith.constant 0 : i32
    return %c0_i32, %c0_i32_0 : i32, i32
  }
  func.func @transform_4(%arg0: i32, %arg1: i32) -> (i32, i32) {
    %c0_i32 = arith.constant 0 : i32
    %c0_i32_0 = arith.constant 0 : i32
    %c0_i32_1 = arith.constant 0 : i32
    return %c0_i32, %c0_i32_0 : i32, i32
  }
  func.func @transform_5(%arg0: i32, %arg1: i32) -> (i32, i32) {
    %c0_i32 = arith.constant 0 : i32
    %c0_i32_0 = arith.constant 0 : i32
    %c0_i32_1 = arith.constant 0 : i32
    return %c0_i32, %c0_i32_0 : i32, i32
  }
  func.func @transform_6(%arg0: i32, %arg1: i32) -> (i32, i32) {
    %c0_i32 = arith.constant 0 : i32
    %c0_i32_0 = arith.constant 0 : i32
    %c0_i32_1 = arith.constant 0 : i32
    return %c0_i32, %c0_i32_0 : i32, i32
  }
  func.func @transform_7(%arg0: i32, %arg1: i32) -> (i32, i32) {
    %c0_i32 = arith.constant 0 : i32
    %c0_i32_0 = arith.constant 0 : i32
    %c0_i32_1 = arith.constant 0 : i32
    return %c0_i32, %c0_i32_0 : i32, i32
  }
  func.func @transform_8(%arg0: i32, %arg1: i32) -> (i32, i32) {
    %c0_i32 = arith.constant 0 : i32
    %c0_i32_0 = arith.constant 0 : i32
    %c0_i32_1 = arith.constant 0 : i32
    return %c0_i32, %c0_i32_0 : i32, i32
  }
  func.func @transform_9(%arg0: i32, %arg1: i32) -> (i32, i32) {
    %c0_i32 = arith.constant 0 : i32
    %c0_i32_0 = arith.constant 0 : i32
    %c0_i32_1 = arith.constant 0 : i32
    return %c0_i32, %c0_i32_0 : i32, i32
  }
  func.func @transform_10(%arg0: i32, %arg1: i32) -> (i32, i32) {
    %c0_i32 = arith.constant 0 : i32
    %c0_i32_0 = arith.constant 0 : i32
    %c0_i32_1 = arith.constant 0 : i32
    return %c0_i32, %c0_i32_0 : i32, i32
  }
  func.func @transform_11(%arg0: i32, %arg1: i32) -> (i32, i32) {
    %c0_i32 = arith.constant 0 : i32
    %c0_i32_0 = arith.constant 0 : i32
    %c0_i32_1 = arith.constant 0 : i32
    return %c0_i32, %c0_i32_0 : i32, i32
  }
  func.func @transform_12(%arg0: i32, %arg1: i32) -> (i32, i32) {
    %c0_i32 = arith.constant 0 : i32
    %c0_i32_0 = arith.constant 0 : i32
    %c0_i32_1 = arith.constant 0 : i32
    return %c0_i32, %c0_i32_0 : i32, i32
  }
  func.func @transform_13(%arg0: i32, %arg1: i32) -> (i32, i32) {
    %c1_i32 = arith.constant 1 : i32
    %0 = arith.muli %arg0, %c1_i32 : i32
    %1 = arith.addi %0, %arg1 : i32
    %c0_i32 = arith.constant 0 : i32
    %c0_i32_0 = arith.constant 0 : i32
    return %1, %c0_i32 : i32, i32
  }
}

</mosaic_0001>

<llo_original>
// kernel: tpu_custom_call.1
$region0: #{tpu_custom_call.1}
  #allocation0 [shape = 'u32[]', space=smem, size = 0x4, offset = 0x4, fixed_abs, tag = 'smem constant byte address 0x4 - core index']
  #allocation1 [shape = 'u32[144,128]{1,0:T(1,128)}', space=vmem, size = 0x12000, scoped, tag = 'internal scratch']
  #allocation2 [shape = 'f32[3,64]{1,0:T(4,128)}', space=vmem, size = 0x800, scoped, tag = 'scratch operand']
  #allocation3 [shape = 'f32[1,1024]{1,0:T(1,128)}', space=vmem, size = 0x1000, scoped, tag = 'scratch operand']
  %s0 = inlined_call_operand.vmem [shape: f32[16,32], index: 0, kind: input, shape index: {}]
  %s1 = inlined_call_operand.hbm [shape: bf16[32,128], index: 1, kind: input, shape index: {}]
  %s2 = inlined_call_operand.hbm [shape: f32[4,64], index: 2, kind: input, shape index: {}]
  %s3 = inlined_call_operand.vmem [shape: f32[1,64], index: 3, kind: input, shape index: {}]
  %s4 = inlined_call_operand.vmem [shape: bf16[64,96], index: 4, kind: input, shape index: {}]
  %s5 = inlined_call_operand.vmem [shape: f32[1,64], index: 5, kind: input, shape index: {}]
  %s6 = inlined_call_operand.hbm [shape: f32[1,1024], index: 6, kind: input, shape index: {}]
  %s7 = inlined_call_operand.hbm [shape: f32[64,1024], index: 7, kind: input, shape index: {}]
  %s8 = inlined_call_operand.hbm [shape: f32[16,1024], index: 8, kind: input, shape index: {}]
  %s9 = inlined_call_operand.hbm [shape: f32[1,64], index: 9, kind: input, shape index: {}]
  %s10 = inlined_call_operand.vmem [shape: bf16[64,32], index: 10, kind: input, shape index: {}]
  %s11 = inlined_call_operand.vmem [shape: f32[1,32], index: 11, kind: input, shape index: {}]
  %s12 = inlined_call_operand.vmem [shape: f32[1,32], index: 12, kind: input, shape index: {}]
  %s13 = inlined_call_operand.hbm [shape: f32[16,32], index: 13, kind: output, shape index: {}]
  %s14 = sld [smem:[#allocation0]]
  $region113: #{tpu_custom_call.1} parent=0
    _
  %s16 = ssub.s32 1, %s14
  %s17 = scalar_select 0, %s16, %s14
  $region1: #{tpu_custom_call.1} parent=0
    #allocation4 [shape = 'u8[8192]{0}', space=vmem, size = 0x2000, scoped, tag = 'input window, operand 1, single buffered']
    #allocation5 [shape = 's32[2]{0}', space=sflag, size = 0x8, scoped, tag = 'scoped memory for tpu_custom_call.1']
    #allocation6 [shape = 's32[2]{0}', space=sflag, size = 0x8, scoped, tag = 'scoped memory for tpu_custom_call.1']
    #allocation7 [shape = 'u8[2048]{0}', space=vmem, size = 0x800, scoped, tag = 'input window, operand 2, single buffered']
    #allocation8 [shape = 's32[1]{0}', space=sflag, size = 0x4, scoped, tag = 'scoped memory for tpu_custom_call.1']
    #allocation9 [shape = 'u8[4096]{0}', space=vmem, size = 0x1000, scoped, tag = 'input window, operand 6, single buffered']
    #allocation10 [shape = 'u8[262144]{0}', space=vmem, size = 0x40000, scoped, tag = 'input window, operand 7, single buffered']
    #allocation11 [shape = 's32[1]{0}', space=sflag, size = 0x4, scoped, tag = 'scoped memory for tpu_custom_call.1']
    #allocation12 [shape = 'u8[65536]{0}', space=vmem, size = 0x10000, scoped, tag = 'input window, operand 8, single buffered']
    #allocation13 [shape = 'u8[512]{0}', space=vmem, size = 0x400, scoped, tag = 'input window, operand 9, single buffered']
    #allocation14 [shape = 's32[1]{0}', space=sflag, size = 0x4, scoped, tag = 'scoped memory for tpu_custom_call.1']
    #allocation15 [shape = 'u8[8192]{0}', space=vmem, size = 0x2000, scoped, tag = 'output window, operand 0']
    %18 = vsyncpa [#allocation5], 0
    %19 = vsyncpa [#allocation8], 0
    %20 = vsyncpa [#allocation11], 0
    %21 = vsyncpa [#allocation14], 0
    %22 = vsyncpa [#allocation6], 0
    %s23 = scalar_lea.sflag [#allocation6], 1
    %24 = vsyncpa %s23, 0
    loop: start=0, step=1, limit=4
    $region2: #{tpu_custom_call.1} parent=1 // loop_pre_header
      _
    $region3: #{tpu_custom_call.1} parent=1 // loop_header
      %s26 = sphi 0, %s30
      %p27 = scmp.ge.s32.totalorder %s26, 4
      %s33 = sphi 0, %s45
      %s34 = sphi 0, %s41
      %s35 = sphi 0, %s33
      %s36 = sphi 0, %s34
      %s37 = sphi 0, %s35
      %s38 = sphi 0, %s36
      %s50 = sphi 0, %s52
      %s53 = sphi 0, %s50
      %s54 = sphi 0, %s53
      %s70 = sphi 0, %s54
      %s74 = sphi 0, %s74
      %s76 = sphi 0, %s74
      %s77 = sphi 0, %s76
      %s91 = sphi 0, %s77
      %s95 = sphi 0, %s95
      %s97 = sphi 0, %s95
      %s98 = sphi 0, %s97
      %s112 = sphi 0, %s98
      %s116 = sphi 0, %s116
      %s118 = sphi 0, %s116
      %s119 = sphi 0, %s118
      %s133 = sphi 0, %s119
      %s137 = sphi 0, %s137
      %s139 = sphi 0, %s137
      %s140 = sphi 0, %s139
      %s154 = sphi 0, %s140
      %s158 = sphi 0, %s158
      %s160 = sphi 0, %s158
      %s161 = sphi 0, %s160
      %s175 = sphi 0, %s161
      %s179 = sphi 0, %s179
      %s181 = sphi 0, %s179
      %s182 = sphi 0, %s181
      %s196 = sphi 0, %s182
      %s200 = sphi 0, %s200
      %s202 = sphi 0, %s200
      %s203 = sphi 0, %s202
      %s217 = sphi 0, %s203
      %s221 = sphi 0, %s221
      %s223 = sphi 0, %s221
      %s224 = sphi 0, %s223
      %s238 = sphi 0, %s224
      %s242 = sphi 0, %s242
      %s244 = sphi 0, %s242
      %s245 = sphi 0, %s244
      %s259 = sphi 0, %s245
      %s263 = sphi 0, %s263
      %s265 = sphi 0, %s263
      %s266 = sphi 0, %s265
      %s280 = sphi 0, %s266
      %s284 = sphi 0, %s284
      %s286 = sphi 0, %s284
      %s287 = sphi 0, %s286
      %s301 = sphi 0, %s287
      %s305 = sphi 0, %s305
      %s307 = sphi 0, %s305
      %s308 = sphi 0, %s307
      %s322 = sphi 0, %s308
      %s330 = sphi 0, %s332
      %s333 = sphi 0, %s330
      %s334 = sphi 0, %s333
      %s350 = sphi 0, %s334
    $region4: #{tpu_custom_call.1} parent=1 // loop_header_branch
      %29 = sbr.rel (%p27) target = $region8
    $region5: #{tpu_custom_call.1} parent=1 // loop_body
      %s31 = ssub.s32 %s26, 1
      %s32 = ssub.s32 %s26, 2
      %s39 = sadd.s32 1, %s34
      %p40 = scmp.ge.s32.totalorder %s39, 1
      %s41 = scalar_select %p40, 0, %s39
      %s42 = sadd.s32 1, %s33
      %s43 = scalar_select %p40, %s42, %s33
      %p44 = scmp.ge.s32.totalorder %s43, 2
      %s45 = scalar_select %p44, 0, %s43
      %s46 = sadd.s32 %s33, %s34
      %s47 = sadd.s32 %s45, %s41
      %s48 = ssub.s32 %s46, %s47
      %p49 = scmp.eq.s32.totalorder %s48, 0
      %s51 = sadd.s32 %s50, 1
      %s52 = scalar_select %p49, %s50, %s51
      %p55 = pneg %p49
      %p56 = scmp.eq.s32.totalorder %s26, 1
      %p57 = por %p55, %p56
      %p58 = scmp.ne.s32.totalorder %s50, %s53
      %p59 = scmp.eq.s32.totalorder %s26, 0
      %p60 = por %p58, %p59
      %p61 = scmp.ne.s32.totalorder %s50, %s53
      %p62 = scmp.eq.s32.totalorder %s31, 1
      %p63 = por %p61, %p62
      %p64 = scmp.ne.s32.totalorder %s53, %s54
      %p65 = scmp.eq.s32.totalorder %s31, 0
      %p66 = por %p64, %p65
      %p67 = scmp.ne.s32.totalorder %s53, %s54
      %p68 = scmp.eq.s32.totalorder %s32, 1
      %p69 = por %p67, %p68
      %p71 = scmp.ne.s32.totalorder %s54, %s70
      %p72 = scmp.eq.s32.totalorder %s32, 0
      %p73 = por %p71, %p72
      %s75 = sadd.s32 %s74, 1
      %p78 = scmp.eq.s32.totalorder %s26, 1
      %p79 = scmp.ne.s32.totalorder %s74, %s76
      %p80 = scmp.eq.s32.totalorder %s26, 0
      %p81 = por %p79, %p80
      %p82 = scmp.ne.s32.totalorder %s74, %s76
      %p83 = scmp.eq.s32.totalorder %s31, 1
      %p84 = por %p82, %p83
      %p85 = scmp.ne.s32.totalorder %s76, %s77
      %p86 = scmp.eq.s32.totalorder %s31, 0
      %p87 = por %p85, %p86
      %p88 = scmp.ne.s32.totalorder %s76, %s77
      %p89 = scmp.eq.s32.totalorder %s32, 1
      %p90 = por %p88, %p89
      %p92 = scmp.ne.s32.totalorder %s77, %s91
      %p93 = scmp.eq.s32.totalorder %s32, 0
      %p94 = por %p92, %p93
      %s96 = sadd.s32 %s95, 1
      %p99 = scmp.eq.s32.totalorder %s26, 1
      %p100 = scmp.ne.s32.totalorder %s95, %s97
      %p101 = scmp.eq.s32.totalorder %s26, 0
      %p102 = por %p100, %p101
      %p103 = scmp.ne.s32.totalorder %s95, %s97
      %p104 = scmp.eq.s32.totalorder %s31, 1
      %p105 = por %p103, %p104
      %p106 = scmp.ne.s32.totalorder %s97, %s98
      %p107 = scmp.eq.s32.totalorder %s31, 0
      %p108 = por %p106, %p107
      %p109 = scmp.ne.s32.totalorder %s97, %s98
      %p110 = scmp.eq.s32.totalorder %s32, 1
      %p111 = por %p109, %p110
      %p113 = scmp.ne.s32.totalorder %s98, %s112
      %p114 = scmp.eq.s32.totalorder %s32, 0
      %p115 = por %p113, %p114
      %s117 = sadd.s32 %s116, 1
      %p120 = scmp.eq.s32.totalorder %s26, 1
      %p121 = scmp.ne.s32.totalorder %s116, %s118
      %p122 = scmp.eq.s32.totalorder %s26, 0
      %p123 = por %p121, %p122
      %p124 = scmp.ne.s32.totalorder %s116, %s118
      %p125 = scmp.eq.s32.totalorder %s31, 1
      %p126 = por %p124, %p125
      %p127 = scmp.ne.s32.totalorder %s118, %s119
      %p128 = scmp.eq.s32.totalorder %s31, 0
      %p129 = por %p127, %p128
      %p130 = scmp.ne.s32.totalorder %s118, %s119
      %p131 = scmp.eq.s32.totalorder %s32, 1
      %p132 = por %p130, %p131
      %p134 = scmp.ne.s32.totalorder %s119, %s133
      %p135 = scmp.eq.s32.totalorder %s32, 0
      %p136 = por %p134, %p135
      %s138 = sadd.s32 %s137, 1
      %p141 = scmp.eq.s32.totalorder %s26, 1
      %p142 = scmp.ne.s32.totalorder %s137, %s139
      %p143 = scmp.eq.s32.totalorder %s26, 0
      %p144 = por %p142, %p143
      %p145 = scmp.ne.s32.totalorder %s137, %s139
      %p146 = scmp.eq.s32.totalorder %s31, 1
      %p147 = por %p145, %p146
      %p148 = scmp.ne.s32.totalorder %s139, %s140
      %p149 = scmp.eq.s32.totalorder %s31, 0
      %p150 = por %p148, %p149
      %p151 = scmp.ne.s32.totalorder %s139, %s140
      %p152 = scmp.eq.s32.totalorder %s32, 1
      %p153 = por %p151, %p152
      %p155 = scmp.ne.s32.totalorder %s140, %s154
      %p156 = scmp.eq.s32.totalorder %s32, 0
      %p157 = por %p155, %p156
      %s159 = sadd.s32 %s158, 1
      %p162 = scmp.eq.s32.totalorder %s26, 1
      %p163 = scmp.ne.s32.totalorder %s158, %s160
      %p164 = scmp.eq.s32.totalorder %s26, 0
      %p165 = por %p163, %p164
      %p166 = scmp.ne.s32.totalorder %s158, %s160
      %p167 = scmp.eq.s32.totalorder %s31, 1
      %p168 = por %p166, %p167
      %p169 = scmp.ne.s32.totalorder %s160, %s161
      %p170 = scmp.eq.s32.totalorder %s31, 0
      %p171 = por %p169, %p170
      %p172 = scmp.ne.s32.totalorder %s160, %s161
      %p173 = scmp.eq.s32.totalorder %s32, 1
      %p174 = por %p172, %p173
      %p176 = scmp.ne.s32.totalorder %s161, %s175
      %p177 = scmp.eq.s32.totalorder %s32, 0
      %p178 = por %p176, %p177
      %s180 = sadd.s32 %s179, 1
      %p183 = scmp.eq.s32.totalorder %s26, 1
      %p184 = scmp.ne.s32.totalorder %s179, %s181
      %p185 = scmp.eq.s32.totalorder %s26, 0
      %p186 = por %p184, %p185
      %p187 = scmp.ne.s32.totalorder %s179, %s181
      %p188 = scmp.eq.s32.totalorder %s31, 1
      %p189 = por %p187, %p188
      %p190 = scmp.ne.s32.totalorder %s181, %s182
      %p191 = scmp.eq.s32.totalorder %s31, 0
      %p192 = por %p190, %p191
      %p193 = scmp.ne.s32.totalorder %s181, %s182
      %p194 = scmp.eq.s32.totalorder %s32, 1
      %p195 = por %p193, %p194
      %p197 = scmp.ne.s32.totalorder %s182, %s196
      %p198 = scmp.eq.s32.totalorder %s32, 0
      %p199 = por %p197, %p198
      %s201 = sadd.s32 %s200, 1
      %p204 = scmp.eq.s32.totalorder %s26, 1
      %p205 = scmp.ne.s32.totalorder %s200, %s202
      %p206 = scmp.eq.s32.totalorder %s26, 0
      %p207 = por %p205, %p206
      %p208 = scmp.ne.s32.totalorder %s200, %s202
      %p209 = scmp.eq.s32.totalorder %s31, 1
      %p210 = por %p208, %p209
      %p211 = scmp.ne.s32.totalorder %s202, %s203
      %p212 = scmp.eq.s32.totalorder %s31, 0
      %p213 = por %p211, %p212
      %p214 = scmp.ne.s32.totalorder %s202, %s203
      %p215 = scmp.eq.s32.totalorder %s32, 1
      %p216 = por %p214, %p215
      %p218 = scmp.ne.s32.totalorder %s203, %s217
      %p219 = scmp.eq.s32.totalorder %s32, 0
      %p220 = por %p218, %p219
      %s222 = sadd.s32 %s221, 1
      %p225 = scmp.eq.s32.totalorder %s26, 1
      %p226 = scmp.ne.s32.totalorder %s221, %s223
      %p227 = scmp.eq.s32.totalorder %s26, 0
      %p228 = por %p226, %p227
      %p229 = scmp.ne.s32.totalorder %s221, %s223
      %p230 = scmp.eq.s32.totalorder %s31, 1
      %p231 = por %p229, %p230
      %p232 = scmp.ne.s32.totalorder %s223, %s224
      %p233 = scmp.eq.s32.totalorder %s31, 0
      %p234 = por %p232, %p233
      %p235 = scmp.ne.s32.totalorder %s223, %s224
      %p236 = scmp.eq.s32.totalorder %s32, 1
      %p237 = por %p235, %p236
      %p239 = scmp.ne.s32.totalorder %s224, %s238
      %p240 = scmp.eq.s32.totalorder %s32, 0
      %p241 = por %p239, %p240
      %s243 = sadd.s32 %s242, 1
      %p246 = scmp.eq.s32.totalorder %s26, 1
      %p247 = scmp.ne.s32.totalorder %s242, %s244
      %p248 = scmp.eq.s32.totalorder %s26, 0
      %p249 = por %p247, %p248
      %p250 = scmp.ne.s32.totalorder %s242, %s244
      %p251 = scmp.eq.s32.totalorder %s31, 1
      %p252 = por %p250, %p251
      %p253 = scmp.ne.s32.totalorder %s244, %s245
      %p254 = scmp.eq.s32.totalorder %s31, 0
      %p255 = por %p253, %p254
      %p256 = scmp.ne.s32.totalorder %s244, %s245
      %p257 = scmp.eq.s32.totalorder %s32, 1
      %p258 = por %p256, %p257
      %p260 = scmp.ne.s32.totalorder %s245, %s259
      %p261 = scmp.eq.s32.totalorder %s32, 0
      %p262 = por %p260, %p261
      %s264 = sadd.s32 %s263, 1
      %p267 = scmp.eq.s32.totalorder %s26, 1
      %p268 = scmp.ne.s32.totalorder %s263, %s265
      %p269 = scmp.eq.s32.totalorder %s26, 0
      %p270 = por %p268, %p269
      %p271 = scmp.ne.s32.totalorder %s263, %s265
      %p272 = scmp.eq.s32.totalorder %s31, 1
      %p273 = por %p271, %p272
      %p274 = scmp.ne.s32.totalorder %s265, %s266
      %p275 = scmp.eq.s32.totalorder %s31, 0
      %p276 = por %p274, %p275
      %p277 = scmp.ne.s32.totalorder %s265, %s266
      %p278 = scmp.eq.s32.totalorder %s32, 1
      %p279 = por %p277, %p278
      %p281 = scmp.ne.s32.totalorder %s266, %s280
      %p282 = scmp.eq.s32.totalorder %s32, 0
      %p283 = por %p281, %p282
      %s285 = sadd.s32 %s284, 1
      %p288 = scmp.eq.s32.totalorder %s26, 1
      %p289 = scmp.ne.s32.totalorder %s284, %s286
      %p290 = scmp.eq.s32.totalorder %s26, 0
      %p291 = por %p289, %p290
      %p292 = scmp.ne.s32.totalorder %s284, %s286
      %p293 = scmp.eq.s32.totalorder %s31, 1
      %p294 = por %p292, %p293
      %p295 = scmp.ne.s32.totalorder %s286, %s287
      %p296 = scmp.eq.s32.totalorder %s31, 0
      %p297 = por %p295, %p296
      %p298 = scmp.ne.s32.totalorder %s286, %s287
      %p299 = scmp.eq.s32.totalorder %s32, 1
      %p300 = por %p298, %p299
      %p302 = scmp.ne.s32.totalorder %s287, %s301
      %p303 = scmp.eq.s32.totalorder %s32, 0
      %p304 = por %p302, %p303
      %s306 = sadd.s32 %s305, 1
      %p309 = scmp.eq.s32.totalorder %s26, 1
      %p310 = scmp.ne.s32.totalorder %s305, %s307
      %p311 = scmp.eq.s32.totalorder %s26, 0
      %p312 = por %p310, %p311
      %p313 = scmp.ne.s32.totalorder %s305, %s307
      %p314 = scmp.eq.s32.totalorder %s31, 1
      %p315 = por %p313, %p314
      %p316 = scmp.ne.s32.totalorder %s307, %s308
      %p317 = scmp.eq.s32.totalorder %s31, 0
      %p318 = por %p316, %p317
      %p319 = scmp.ne.s32.totalorder %s307, %s308
      %p320 = scmp.eq.s32.totalorder %s32, 1
      %p321 = por %p319, %p320
      %p323 = scmp.ne.s32.totalorder %s308, %s322
      %p324 = scmp.eq.s32.totalorder %s32, 0
      %p325 = por %p323, %p324
      %s326 = sadd.s32 %s33, %s34
      %s327 = sadd.s32 %s45, %s41
      %s328 = ssub.s32 %s326, %s327
      %p329 = scmp.eq.s32.totalorder %s328, 0
      %s331 = sadd.s32 %s330, 1
      %s332 = scalar_select %p329, %s330, %s331
      %p335 = pneg %p329
      %p336 = scmp.eq.s32.totalorder %s26, 1
      %p337 = por %p335, %p336
      %p338 = scmp.ne.s32.totalorder %s330, %s333
      %p339 = scmp.eq.s32.totalorder %s26, 0
      %p340 = por %p338, %p339
      %p341 = scmp.ne.s32.totalorder %s330, %s333
      %p342 = scmp.eq.s32.totalorder %s31, 1
      %p343 = por %p341, %p342
      %p344 = scmp.ne.s32.totalorder %s333, %s334
      %p345 = scmp.eq.s32.totalorder %s31, 0
      %p346 = por %p344, %p345
      %p347 = scmp.ne.s32.totalorder %s333, %s334
      %p348 = scmp.eq.s32.totalorder %s32, 1
      %p349 = por %p347, %p348
      %p351 = scmp.ne.s32.totalorder %s334, %s350
      %p352 = scmp.eq.s32.totalorder %s32, 0
      %p353 = por %p351, %p352
      %p354 = scmp.le.s32.totalorder 1, %s26
      %p355 = scmp.lt.s32.totalorder %s26, 3
      %p356 = pnand %p354, %p355
      %p357 = pneg %p356
      // Predicated region
      $region9: #{tpu_custom_call.1} parent=5 // pred_check
        _
      $region10: #{tpu_custom_call.1} parent=5 // pred_check_branch
        %359 = sbr.rel (%p356) target = $region12
      $region11: #{tpu_custom_call.1} parent=5 // pred_region
        %s360 = ssub.s32 %s26, 1
        // Predicated region
        $region13: #{tpu_custom_call.1} parent=11 // pred_check
          %p361 = pneg %p87
        $region14: #{tpu_custom_call.1} parent=11 // pred_check_branch
          %363 = sbr.rel (%p361) target = $region16
        $region15: #{tpu_custom_call.1} parent=11 // pred_region
          %s365 = ssub.s32 256, 256
          %366 = vsyncadd [#allocation5], %s365
          %s367 = sshll.u32 [#allocation4], 4
          %s368 = int_to_ptr.vmem [resolvable:$true] %s367
          %373 = dma.hbm_to_vmem [thread:$0]  %s1, 256, %s368, [#allocation5], 64, 64, 4
        $region16: #{tpu_custom_call.1} parent=11 // pred_fallthru
          _
        // Predicated region
        $region17: #{tpu_custom_call.1} parent=11 // pred_check
          %p374 = pneg %p108
        $region18: #{tpu_custom_call.1} parent=11 // pred_check_branch
          %376 = sbr.rel (%p374) target = $region20
        $region19: #{tpu_custom_call.1} parent=11 // pred_region
          %s378 = ssub.s32 64, 64
          %379 = vsyncadd [#allocation8], %s378
          %s381 = sshll.u32 [#allocation7], 4
          %s382 = int_to_ptr.vmem [resolvable:$true] %s381
          %384 = dma.hbm_to_vmem [thread:$0]  %s2, 64, %s382, [#allocation8]
        $region20: #{tpu_custom_call.1} parent=11 // pred_fallthru
          _
        // Predicated region
        $region21: #{tpu_custom_call.1} parent=11 // pred_check
          %p385 = pneg %p129
        $region22: #{tpu_custom_call.1} parent=11 // pred_check_branch
          %387 = sbr.rel (%p385) target = $region24
        $region23: #{tpu_custom_call.1} parent=11 // pred_region
          _
        $region24: #{tpu_custom_call.1} parent=11 // pred_fallthru
          _
        // Predicated region
        $region25: #{tpu_custom_call.1} parent=11 // pred_check
          %p388 = pneg %p150
        $region26: #{tpu_custom_call.1} parent=11 // pred_check_branch
          %390 = sbr.rel (%p388) target = $region28
        $region27: #{tpu_custom_call.1} parent=11 // pred_region
          _
        $region28: #{tpu_custom_call.1} parent=11 // pred_fallthru
          _
        // Predicated region
        $region29: #{tpu_custom_call.1} parent=11 // pred_check
          %p391 = pneg %p171
        $region30: #{tpu_custom_call.1} parent=11 // pred_check_branch
          %393 = sbr.rel (%p391) target = $region32
        $region31: #{tpu_custom_call.1} parent=11 // pred_region
          _
        $region32: #{tpu_custom_call.1} parent=11 // pred_fallthru
          _
        // Predicated region
        $region33: #{tpu_custom_call.1} parent=11 // pred_check
          %p394 = pneg %p192
        $region34: #{tpu_custom_call.1} parent=11 // pred_check_branch
          %396 = sbr.rel (%p394) target = $region36
        $region35: #{tpu_custom_call.1} parent=11 // pred_region
          %s398 = ssub.s32 128, 128
          %399 = vsyncadd [#allocation8], %s398
          %s401 = sshll.u32 [#allocation9], 4
          %s402 = int_to_ptr.vmem [resolvable:$true] %s401
          %404 = dma.hbm_to_vmem [thread:$0]  %s6, 128, %s402, [#allocation8]
        $region36: #{tpu_custom_call.1} parent=11 // pred_fallthru
          _
        // Predicated region
        $region37: #{tpu_custom_call.1} parent=11 // pred_check
          %p405 = pneg %p213
        $region38: #{tpu_custom_call.1} parent=11 // pred_check_branch
          %407 = sbr.rel (%p405) target = $region40
        $region39: #{tpu_custom_call.1} parent=11 // pred_region
          %s409 = ssub.s32 8192, 8192
          %410 = vsyncadd [#allocation11], %s409
          %s411 = sshll.u32 [#allocation10], 4
          %s412 = int_to_ptr.vmem [resolvable:$true] %s411
          %417 = dma.hbm_to_vmem [thread:$0]  %s7, 8192, %s412, [#allocation11], 1024, 1024, 64
        $region40: #{tpu_custom_call.1} parent=11 // pred_fallthru
          _
        // Predicated region
        $region41: #{tpu_custom_call.1} parent=11 // pred_check
          %p418 = pneg %p234
        $region42: #{tpu_custom_call.1} parent=11 // pred_check_branch
          %420 = sbr.rel (%p418) target = $region44
        $region43: #{tpu_custom_call.1} parent=11 // pred_region
          %s422 = ssub.s32 2048, 2048
          %423 = vsyncadd [#allocation11], %s422
          %s424 = sshll.u32 [#allocation12], 4
          %s425 = int_to_ptr.vmem [resolvable:$true] %s424
          %430 = dma.hbm_to_vmem [thread:$0]  %s8, 2048, %s425, [#allocation11], 1024, 1024, 64
        $region44: #{tpu_custom_call.1} parent=11 // pred_fallthru
          _
        // Predicated region
        $region45: #{tpu_custom_call.1} parent=11 // pred_check
          %p431 = pneg %p255
        $region46: #{tpu_custom_call.1} parent=11 // pred_check_branch
          %433 = sbr.rel (%p431) target = $region48
        $region47: #{tpu_custom_call.1} parent=11 // pred_region
          %s435 = ssub.s32 16, 16
          %436 = vsyncadd [#allocation14], %s435
          %s438 = sshll.u32 [#allocation13], 4
          %s439 = int_to_ptr.vmem [resolvable:$true] %s438
          %441 = dma.hbm_to_vmem [thread:$0]  %s9, 16, %s439, [#allocation14]
        $region48: #{tpu_custom_call.1} parent=11 // pred_fallthru
          _
        // Predicated region
        $region49: #{tpu_custom_call.1} parent=11 // pred_check
          %p442 = pneg %p276
        $region50: #{tpu_custom_call.1} parent=11 // pred_check_branch
          %444 = sbr.rel (%p442) target = $region52
        $region51: #{tpu_custom_call.1} parent=11 // pred_region
          _
        $region52: #{tpu_custom_call.1} parent=11 // pred_fallthru
          _
        // Predicated region
        $region53: #{tpu_custom_call.1} parent=11 // pred_check
          %p445 = pneg %p297
        $region54: #{tpu_custom_call.1} parent=11 // pred_check_branch
          %447 = sbr.rel (%p445) target = $region56
        $region55: #{tpu_custom_call.1} parent=11 // pred_region
          _
        $region56: #{tpu_custom_call.1} parent=11 // pred_fallthru
          _
        // Predicated region
        $region57: #{tpu_custom_call.1} parent=11 // pred_check
          %p448 = pneg %p318
        $region58: #{tpu_custom_call.1} parent=11 // pred_check_branch
          %450 = sbr.rel (%p448) target = $region60
        $region59: #{tpu_custom_call.1} parent=11 // pred_region
          _
        $region60: #{tpu_custom_call.1} parent=11 // pred_fallthru
          _
      $region12: #{tpu_custom_call.1} parent=5 // pred_fallthru
        _
      %p451 = scmp.lt.s32.totalorder %s26, 2
      // Predicated region
      $region61: #{tpu_custom_call.1} parent=5 // pred_check
        %p452 = pneg %p451
      $region62: #{tpu_custom_call.1} parent=5 // pred_check_branch
        %454 = sbr.rel (%p452) target = $region64
      $region63: #{tpu_custom_call.1} parent=5 // pred_region
        // Predicated region
        $region65: #{tpu_custom_call.1} parent=63 // pred_check
          %p455 = pneg %p60
        $region66: #{tpu_custom_call.1} parent=63 // pred_check_branch
          %457 = sbr.rel (%p455) target = $region68
        $region67: #{tpu_custom_call.1} parent=63 // pred_region
          %s458 = sadd.s32 %s33, %s34
          %p459 = scmp.lt.s32.totalorder %s458, 1
          %s460 = scalar_select %p459, %s458, 1
          %s461 = smul.addr %s460, 8
          %s462 = scalar_lea.vmem %s0, %s461
          %s463 = sadd.s32 %s33, %s34
        $region68: #{tpu_custom_call.1} parent=63 // pred_fallthru
          _
      $region64: #{tpu_custom_call.1} parent=5 // pred_fallthru
        _
      %p464 = scmp.le.s32.totalorder 1, %s26
      %p465 = scmp.lt.s32.totalorder %s26, 3
      %p466 = pnand %p464, %p465
      %p467 = pneg %p466
      // Predicated region
      $region69: #{tpu_custom_call.1} parent=5 // pred_check
        _
      $region70: #{tpu_custom_call.1} parent=5 // pred_check_branch
        %469 = sbr.rel (%p466) target = $region72
      $region71: #{tpu_custom_call.1} parent=5 // pred_region
        %s470 = ssub.s32 %s26, 1
        // Predicated region
        $region73: #{tpu_custom_call.1} parent=71 // pred_check
          %p471 = pneg %p87
        $region74: #{tpu_custom_call.1} parent=71 // pred_check_branch
          %473 = sbr.rel (%p471) target = $region76
        $region75: #{tpu_custom_call.1} parent=71 // pred_region
          %474 = dma.done [#allocation5], 256
        $region76: #{tpu_custom_call.1} parent=71 // pred_fallthru
          _
        // Predicated region
        $region77: #{tpu_custom_call.1} parent=71 // pred_check
          %p475 = pneg %p108
        $region78: #{tpu_custom_call.1} parent=71 // pred_check_branch
          %477 = sbr.rel (%p475) target = $region80
        $region79: #{tpu_custom_call.1} parent=71 // pred_region
          %478 = dma.done [#allocation8], 64
        $region80: #{tpu_custom_call.1} parent=71 // pred_fallthru
          _
        // Predicated region
        $region81: #{tpu_custom_call.1} parent=71 // pred_check
          %p479 = pneg %p192
        $region82: #{tpu_custom_call.1} parent=71 // pred_check_branch
          %481 = sbr.rel (%p479) target = $region84
        $region83: #{tpu_custom_call.1} parent=71 // pred_region
          %482 = dma.done [#allocation8], 128
        $region84: #{tpu_custom_call.1} parent=71 // pred_fallthru
          _
        // Predicated region
        $region85: #{tpu_custom_call.1} parent=71 // pred_check
          %p483 = pneg %p213
        $region86: #{tpu_custom_call.1} parent=71 // pred_check_branch
          %485 = sbr.rel (%p483) target = $region88
        $region87: #{tpu_custom_call.1} parent=71 // pred_region
          %486 = dma.done [#allocation11], 8192
        $region88: #{tpu_custom_call.1} parent=71 // pred_fallthru
          _
        // Predicated region
        $region89: #{tpu_custom_call.1} parent=71 // pred_check
          %p487 = pneg %p234
        $region90: #{tpu_custom_call.1} parent=71 // pred_check_branch
          %489 = sbr.rel (%p487) target = $region92
        $region91: #{tpu_custom_call.1} parent=71 // pred_region
          %490 = dma.done [#allocation11], 2048
        $region92: #{tpu_custom_call.1} parent=71 // pred_fallthru
          _
        // Predicated region
        $region93: #{tpu_custom_call.1} parent=71 // pred_check
          %p491 = pneg %p255
        $region94: #{tpu_custom_call.1} parent=71 // pred_check_branch
          %493 = sbr.rel (%p491) target = $region96
        $region95: #{tpu_custom_call.1} parent=71 // pred_region
          %494 = dma.done [#allocation14], 16
        $region96: #{tpu_custom_call.1} parent=71 // pred_fallthru
          _
        %s495 = sadd.s32 %s35, %s36
        %p496 = scmp.lt.s32.totalorder %s495, 1
        %s497 = scalar_select %p496, %s495, 1
        %s498 = smul.addr %s497, 8
        %s499 = scalar_lea.vmem %s0, %s498
        %p500 = pneg %p66
        %p501 = pneg %p63
        %p502 = pneg %p87
        %p503 = pneg %p84
        %p504 = pneg %p108
        %p505 = pneg %p105
        %p506 = pneg %p129
        %p507 = pneg %p126
        %p508 = pneg %p150
        %p509 = pneg %p147
        %p510 = pneg %p171
        %p511 = pneg %p168
        %p512 = pneg %p192
        %p513 = pneg %p189
        %p514 = pneg %p213
        %p515 = pneg %p210
        %p516 = pneg %p234
        %p517 = pneg %p231
        %p518 = pneg %p255
        %p519 = pneg %p252
        %p520 = pneg %p276
        %p521 = pneg %p273
        %p522 = pneg %p297
        %p523 = pneg %p294
        %p524 = pneg %p318
        %p525 = pneg %p315
        %p526 = pneg %p346
        %p527 = pneg %p343
        %s528 = sand.u32 %s333, 1
        %s529 = scalar_lea.sflag [#allocation6], %s528
        %s530 = sand.u32 %s333, 1
        %s531 = smul.addr %s530, 8
        %s532 = scalar_lea.vmem [#allocation15], %s531
        %s533 = sadd.s32 %s35, %s36
        %p534 = scmp.lt.s32.totalorder %s533, 1
        %s535 = scalar_select %p534, %s533, 1
        %s536 = smul.addr %s535, 8
        %s537 = scalar_lea.vmem %s0, %s536
        %s538 = sadd.s32 %s35, %s36
        %s539 = sadd.s32 %s35, %s36
        %p541 = scmp.eq.s32.totalorder %s36, 0
        // Predicated region
        $region97: #{tpu_custom_call.1} parent=71 // pred_check
          %p542 = pneg %p541
        $region98: #{tpu_custom_call.1} parent=71 // pred_check_branch
          %544 = sbr.rel (%p542) target = $region100
        $region99: #{tpu_custom_call.1} parent=71 // pred_region
          %vm545 = vcmask 518144
          %546 = vst.msk [vmem:[#allocation2] sm:$0x7] %vm545, 0.0
          %547 = vst [vmem:[#allocation3] sm:$0xff] 0.0
        $region100: #{tpu_custom_call.1} parent=71 // pred_fallthru
          _
        %v548 = vld [vmem:[%s537] sm:$0xff]
        %v549 = vpack.c.bf16 %v548, %v548
        %v550 = vld [vmem:[#allocation4] sm:$0xf]
        %v551 = vld [vmem:[#allocation4 + $0x4] sm:$0xf]
        %v552 = vld [vmem:[#allocation4 + $0x8] sm:$0xf]
        %v553 = vld [vmem:[#allocation4 + $0xc] sm:$0xf]
        %v558 = vunpack.c.l.b16 %v550
        %v559 = vunpack.c.l.b16 %v551
        %v560 = vunpack.c.l.b16 %v552
        %v561 = vunpack.c.l.b16 %v553
        %v562 = vpack.c.b16 %v559, %v558
        %v563 = vpack.c.b16 %v561, %v560
        %vm566 = vcmask 261120
        %v568 = vsel %vm566, %v549, 0
        %570 = vmatprep.subr.bf16.mxu0 0
        %571 = vmatpush1.bf16.msra.mxu0 0
        %572 = vmatprep.subr.bf16.mxu0 0
        %573 = vmatpush1.bf16.msra.mxu0 0
        %574 = vmatprep.subr.bf16.mxu0 0
        %575 = vmatpush1.bf16.msra.mxu0 0
        %576 = vmatprep.subr.bf16.mxu0 0
        %577 = vmatpush1.bf16.msra.mxu0 0
        %578 = vmatprep.subr.bf16.mxu0 0
        %579 = vmatpush1.bf16.msra.mxu0 0
        %580 = vmatprep.subr.bf16.mxu0 0
        %581 = vmatpush1.bf16.msra.mxu0 0
        %582 = vmatprep.subr.bf16.mxu0 0
        %583 = vmatpush1.bf16.msra.mxu0 %v563
        %584 = vmatprep.subr.bf16.mxu0 0
        %585 = vmatpush1.bf16.msra.mxu0 %v562
        %586 = vmatprep.subr.bf16.mxu0 0
        %587 = vmatpush2.bf16.msra.mxu0 0
        %588 = vmatprep.subr.bf16.mxu0 0
        %589 = vmatpush2.bf16.msra.mxu0 0
        %590 = vmatprep.subr.bf16.mxu0 0
        %591 = vmatpush2.bf16.msra.mxu0 0
        %592 = vmatprep.subr.bf16.mxu0 0
        %593 = vmatpush2.bf16.msra.mxu0 0
        %594 = vmatprep.subr.bf16.mxu0 0
        %595 = vmatpush2.bf16.msra.mxu0 0
        %596 = vmatprep.subr.bf16.mxu0 0
        %597 = vmatpush2.bf16.msra.mxu0 0
        %598 = vmatprep.subr.bf16.mxu0 0
        %599 = vmatpush2.bf16.msra.mxu0 0
        %600 = vmatprep.subr.bf16.mxu0 0
        %601 = vmatpush2.bf16.msra.mxu0 0
        %602 = vmatprep.mubr.bf16.mxu0 0
        %603 = vmatmul.mubr.bf16.gmra.mxu0 %v568
        %v604 = vpop.f32.mrf.mxu0
        %v605 = vadd.f32 0.0, %v604
        %v606 = vpop.f32.mrf.mxu0
        %v607 = vpop.f32.mrf.mxu0
        %v608 = vpop.f32.mrf.mxu0
        %609 = vdwg.mxu0
        %v610 = vld [vmem:[#allocation2] sm:$0x7]
        %v612 = vrot.slane %v605, 5
        %vm614 = vcmask 1042432
        %v615 = vsel %vm614, %v610, %v612
        %v616 = vld [vmem:[#allocation7] sm:$0xf]
        %v617 = vlaneseq
        %v618 = vshrl.u32 %v617, 7
        %v619 = vsub.s32 0, %v618
        %v620 = vrot.slane %v616, %v619
        %v621 = vmul.f32 %v615, %v620
        %v622 = vlaneseq
        %v623 = vshrl.u32 %v622, 7
        %v624 = vsub.s32 1, %v623
        %v625 = vrot.slane %v616, %v624
        %v626 = vmul.f32 %v615, %v625
        %v627 = vmul.f32 %v612, %v625
        %vm630 = vcmask 1046528
        %v631 = vrot.slane %v626, 1
        %v632 = vrot.slane %v627, 1
        %v633 = vsel %vm630, %v631, %v632
        %v635 = vadd.f32 %v621, %v633
        %v636 = vlaneseq
        %v637 = vshrl.u32 %v636, 7
        %v638 = vsub.s32 2, %v637
        %v639 = vrot.slane %v616, %v638
        %v640 = vmul.f32 %v615, %v639
        %v641 = vmul.f32 %v612, %v639
        %vm644 = vcmask 1045504
        %v645 = vrot.slane %v640, 2
        %v646 = vrot.slane %v641, 2
        %v647 = vsel %vm644, %v645, %v646
        %v649 = vadd.f32 %v635, %v647
        %v650 = vlaneseq
        %v651 = vshrl.u32 %v650, 7
        %v652 = vsub.s32 3, %v651
        %v653 = vrot.slane %v616, %v652
        %v654 = vmul.f32 %v615, %v653
        %v655 = vmul.f32 %v612, %v653
        %vm658 = vcmask 1044480
        %v659 = vrot.slane %v654, 3
        %v660 = vrot.slane %v655, 3
        %v661 = vsel %vm658, %v659, %v660
        %v663 = vadd.f32 %v649, %v661
        %v664 = vld [vmem:[%s3] sm:$0x1]
        %v666 = vlaneseq
        %v667 = vshrl.u32 %v666, 7
        %v668 = vsub.s32 0, %v667
        %v669 = vrot.slane %v664, %v668
        %v671 = vadd.f32 %v663, %v669
        %v672 = vsub.f32 0.0, %v671
        %v673 = vmul.f32 %v672, 1.442695
        %v674 = vpow.pop %v673
        %v675 = vadd.f32 %v674, 1.0
        %v676 = vrcp.pop %v675
        %v677 = vmul.f32 1.0, %v676
        %v678 = vmul.f32 %v671, %v677
        %vm679 = vcmask 518144
        %680 = vst.msk [vmem:[#allocation2] sm:$0x7] %vm679, %v612
        %v681 = vpack.c.bf16 %v678, %v678
        %v682 = vld [vmem:[%s4] sm:$0xf]
        %v683 = vld [vmem:[%s4 + $0x4] sm:$0xf]
        %v684 = vld [vmem:[%s4 + $0x8] sm:$0xf]
        %v685 = vld [vmem:[%s4 + $0xc] sm:$0xf]
        %v686 = vld [vmem:[%s4 + $0x10] sm:$0xf]
        %v687 = vld [vmem:[%s4 + $0x14] sm:$0xf]
        %v688 = vld [vmem:[%s4 + $0x18] sm:$0xf]
        %v689 = vld [vmem:[%s4 + $0x1c] sm:$0xf]
        %v698 = vunpack.c.l.b16 %v682
        %v699 = vunpack.c.l.b16 %v683
        %v700 = vunpack.c.l.b16 %v684
        %v701 = vunpack.c.l.b16 %v685
        %v702 = vunpack.c.l.b16 %v686
        %v703 = vunpack.c.l.b16 %v687
        %v704 = vunpack.c.l.b16 %v688
        %v705 = vunpack.c.l.b16 %v689
        %v706 = vpack.c.b16 %v699, %v698
        %v707 = vpack.c.b16 %v701, %v700
        %v708 = vpack.c.b16 %v703, %v702
        %v709 = vpack.c.b16 %v705, %v704
        %vm714 = vcmask 523264
        %v716 = vsel %vm714, %v681, 0
        %718 = vmatprep.subr.bf16.mxu0 0
        %719 = vmatpush1.bf16.msra.mxu0 0
        %720 = vmatprep.subr.bf16.mxu0 0
        %721 = vmatpush1.bf16.msra.mxu0 0
        %722 = vmatprep.subr.bf16.mxu0 0
        %723 = vmatpush1.bf16.msra.mxu0 0
        %724 = vmatprep.subr.bf16.mxu0 0
        %725 = vmatpush1.bf16.msra.mxu0 0
        %726 = vmatprep.subr.bf16.mxu0 0
        %727 = vmatpush1.bf16.msra.mxu0 %v709
        %728 = vmatprep.subr.bf16.mxu0 0
        %729 = vmatpush1.bf16.msra.mxu0 %v708
        %730 = vmatprep.subr.bf16.mxu0 0
        %731 = vmatpush1.bf16.msra.mxu0 %v707
        %732 = vmatprep.subr.bf16.mxu0 0
        %733 = vmatpush1.bf16.msra.mxu0 %v706
        %734 = vmatprep.subr.bf16.mxu0 0
        %735 = vmatpush2.bf16.msra.mxu0 0
        %736 = vmatprep.subr.bf16.mxu0 0
        %737 = vmatpush2.bf16.msra.mxu0 0
        %738 = vmatprep.subr.bf16.mxu0 0
        %739 = vmatpush2.bf16.msra.mxu0 0
        %740 = vmatprep.subr.bf16.mxu0 0
        %741 = vmatpush2.bf16.msra.mxu0 0
        %742 = vmatprep.subr.bf16.mxu0 0
        %743 = vmatpush2.bf16.msra.mxu0 0
        %744 = vmatprep.subr.bf16.mxu0 0
        %745 = vmatpush2.bf16.msra.mxu0 0
        %746 = vmatprep.subr.bf16.mxu0 0
        %747 = vmatpush2.bf16.msra.mxu0 0
        %748 = vmatprep.subr.bf16.mxu0 0
        %749 = vmatpush2.bf16.msra.mxu0 0
        %750 = vmatprep.mubr.bf16.mxu0 0
        %751 = vmatmul.mubr.bf16.gmra.mxu0 %v716
        %v752 = vpop.f32.mrf.mxu0
        %v753 = vadd.f32 0.0, %v752
        %v754 = vpop.f32.mrf.mxu0
        %v755 = vpop.f32.mrf.mxu0
        %v756 = vpop.f32.mrf.mxu0
        %757 = vdwg.mxu0
        %v758 = vld [vmem:[%s5] sm:$0x1]
        %v760 = vlaneseq
        %v761 = vshrl.u32 %v760, 7
        %v762 = vsub.s32 0, %v761
        %v763 = vrot.slane %v758, %v762
        %v765 = vadd.f32 %v753, %v763
        %v766 = vmax.f32 %v765, 0.0
        %v767 = vand.u32 2147483647, %v765
        %v768 = vsub.f32 0.0, %v767
        %v769 = vmul.f32 %v768, 1.442695
        %v770 = vpow.pop %v769
        %v771 = vadd.f32 %v770, 1.0
        %v772 = vlog2.pop %v771
        %v773 = vmul.f32 %v772, 0.6931472
        %v774 = vadd.f32 %v766, %v773
        %v775 = vmul.f32 %v774, %v678
        %v776 = vld [vmem:[#allocation10] sm:$0xff]
        %v777 = vld [vmem:[#allocation10 + $0x8] sm:$0xff]
        %v778 = vld [vmem:[#allocation10 + $0x10] sm:$0xff]
        %v779 = vld [vmem:[#allocation10 + $0x18] sm:$0xff]
        %v780 = vld [vmem:[#allocation10 + $0x20] sm:$0xff]
        %v781 = vld [vmem:[#allocation10 + $0x28] sm:$0xff]
        %v782 = vld [vmem:[#allocation10 + $0x30] sm:$0xff]
        %v783 = vld [vmem:[#allocation10 + $0x38] sm:$0xff]
        %v784 = vld [vmem:[#allocation10 + $0x40] sm:$0xff]
        %v785 = vld [vmem:[#allocation10 + $0x48] sm:$0xff]
        %v786 = vld [vmem:[#allocation10 + $0x50] sm:$0xff]
        %v787 = vld [vmem:[#allocation10 + $0x58] sm:$0xff]
        %v788 = vld [vmem:[#allocation10 + $0x60] sm:$0xff]
        %v789 = vld [vmem:[#allocation10 + $0x68] sm:$0xff]
        %v790 = vld [vmem:[#allocation10 + $0x70] sm:$0xff]
        %v791 = vld [vmem:[#allocation10 + $0x78] sm:$0xff]
        %v792 = vld [vmem:[#allocation10 + $0x80] sm:$0xff]
        %v793 = vld [vmem:[#allocation10 + $0x88] sm:$0xff]
        %v794 = vld [vmem:[#allocation10 + $0x90] sm:$0xff]
        %v795 = vld [vmem:[#allocation10 + $0x98] sm:$0xff]
        %v796 = vld [vmem:[#allocation10 + $0xa0] sm:$0xff]
        %v797 = vld [vmem:[#allocation10 + $0xa8] sm:$0xff]
        %v798 = vld [vmem:[#allocation10 + $0xb0] sm:$0xff]
        %v799 = vld [vmem:[#allocation10 + $0xb8] sm:$0xff]
        %v800 = vld [vmem:[#allocation10 + $0xc0] sm:$0xff]
        %v801 = vld [vmem:[#allocation10 + $0xc8] sm:$0xff]
        %v802 = vld [vmem:[#allocation10 + $0xd0] sm:$0xff]
        %v803 = vld [vmem:[#allocation10 + $0xd8] sm:$0xff]
        %v804 = vld [vmem:[#allocation10 + $0xe0] sm:$0xff]
        %v805 = vld [vmem:[#allocation10 + $0xe8] sm:$0xff]
        %v806 = vld [vmem:[#allocation10 + $0xf0] sm:$0xff]
        %v807 = vld [vmem:[#allocation10 + $0xf8] sm:$0xff]
        %v808 = vld [vmem:[#allocation10 + $0x100] sm:$0xff]
        %v809 = vld [vmem:[#allocation10 + $0x108] sm:$0xff]
        %v810 = vld [vmem:[#allocation10 + $0x110] sm:$0xff]
        %v811 = vld [vmem:[#allocation10 + $0x118] sm:$0xff]
        %v812 = vld [vmem:[#allocation10 + $0x120] sm:$0xff]
        %v813 = vld [vmem:[#allocation10 + $0x128] sm:$0xff]
        %v814 = vld [vmem:[#allocation10 + $0x130] sm:$0xff]
        %v815 = vld [vmem:[#allocation10 + $0x138] sm:$0xff]
        %v816 = vld [vmem:[#allocation10 + $0x140] sm:$0xff]
        %v817 = vld [vmem:[#allocation10 + $0x148] sm:$0xff]
        %v818 = vld [vmem:[#allocation10 + $0x150] sm:$0xff]
        %v819 = vld [vmem:[#allocation10 + $0x158] sm:$0xff]
        %v820 = vld [vmem:[#allocation10 + $0x160] sm:$0xff]
        %v821 = vld [vmem:[#allocation10 + $0x168] sm:$0xff]
        %v822 = vld [vmem:[#allocation10 + $0x170] sm:$0xff]
        %v823 = vld [vmem:[#allocation10 + $0x178] sm:$0xff]
        %v824 = vld [vmem:[#allocation10 + $0x180] sm:$0xff]
        %v825 = vld [vmem:[#allocation10 + $0x188] sm:$0xff]
        %v826 = vld [vmem:[#allocation10 + $0x190] sm:$0xff]
        %v827 = vld [vmem:[#allocation10 + $0x198] sm:$0xff]
        %v828 = vld [vmem:[#allocation10 + $0x1a0] sm:$0xff]
        %v829 = vld [vmem:[#allocation10 + $0x1a8] sm:$0xff]
        %v830 = vld [vmem:[#allocation10 + $0x1b0] sm:$0xff]
        %v831 = vld [vmem:[#allocation10 + $0x1b8] sm:$0xff]
        %v832 = vld [vmem:[#allocation10 + $0x1c0] sm:$0xff]
        %v833 = vld [vmem:[#allocation10 + $0x1c8] sm:$0xff]
        %v834 = vld [vmem:[#allocation10 + $0x1d0] sm:$0xff]
        %v835 = vld [vmem:[#allocation10 + $0x1d8] sm:$0xff]
        %v836 = vld [vmem:[#allocation10 + $0x1e0] sm:$0xff]
        %v837 = vld [vmem:[#allocation10 + $0x1e8] sm:$0xff]
        %v838 = vld [vmem:[#allocation10 + $0x1f0] sm:$0xff]
        %v839 = vld [vmem:[#allocation10 + $0x1f8] sm:$0xff]
        %v841 = vsel %vm714, %v774, 0
        %843 = vmatprep.subr.mxu0 0.0
        %844 = vmatpush1.msra.mxu0 0.0
        %845 = vmatprep.subr.mxu0 0.0
        %846 = vmatpush1.msra.mxu0 0.0
        %847 = vmatprep.subr.mxu0 0.0
        %848 = vmatpush1.msra.mxu0 0.0
        %849 = vmatprep.subr.mxu0 0.0
        %850 = vmatpush1.msra.mxu0 0.0
        %851 = vmatprep.subr.mxu0 0.0
        %852 = vmatpush1.msra.mxu0 0.0
        %853 = vmatprep.subr.mxu0 0.0
        %854 = vmatpush1.msra.mxu0 0.0
        %855 = vmatprep.subr.mxu0 0.0
        %856 = vmatpush1.msra.mxu0 0.0
        %857 = vmatprep.subr.mxu0 0.0
        %858 = vmatpush1.msra.mxu0 0.0
        %859 = vmatprep.subr.mxu0 %v833
        %860 = vmatpush1.msra.mxu0 %v832
        %861 = vmatprep.subr.mxu0 %v825
        %862 = vmatpush1.msra.mxu0 %v824
        %863 = vmatprep.subr.mxu0 %v817
        %864 = vmatpush1.msra.mxu0 %v816
        %865 = vmatprep.subr.mxu0 %v809
        %866 = vmatpush1.msra.mxu0 %v808
        %867 = vmatprep.subr.mxu0 %v801
        %868 = vmatpush1.msra.mxu0 %v800
        %869 = vmatprep.subr.mxu0 %v793
        %870 = vmatpush1.msra.mxu0 %v792
        %871 = vmatprep.subr.mxu0 %v785
        %872 = vmatpush1.msra.mxu0 %v784
        %873 = vmatprep.subr.mxu0 %v777
        %874 = vmatpush1.msra.mxu0 %v776
        %875 = vmatprep.subr.mxu0 0.0
        %876 = vmatpush2.msra.mxu0 0.0
        %877 = vmatprep.subr.mxu0 0.0
        %878 = vmatpush2.msra.mxu0 0.0
        %879 = vmatprep.subr.mxu0 0.0
        %880 = vmatpush2.msra.mxu0 0.0
        %881 = vmatprep.subr.mxu0 0.0
        %882 = vmatpush2.msra.mxu0 0.0
        %883 = vmatprep.subr.mxu0 0.0
        %884 = vmatpush2.msra.mxu0 0.0
        %885 = vmatprep.subr.mxu0 0.0
        %886 = vmatpush2.msra.mxu0 0.0
        %887 = vmatprep.subr.mxu0 0.0
        %888 = vmatpush2.msra.mxu0 0.0
        %889 = vmatprep.subr.mxu0 0.0
        %890 = vmatpush2.msra.mxu0 0.0
        %891 = vmatprep.subr.mxu0 0.0
        %892 = vmatpush2.msra.mxu0 0.0
        %893 = vmatprep.subr.mxu0 0.0
        %894 = vmatpush2.msra.mxu0 0.0
        %895 = vmatprep.subr.mxu0 0.0
        %896 = vmatpush2.msra.mxu0 0.0
        %897 = vmatprep.subr.mxu0 0.0
        %898 = vmatpush2.msra.mxu0 0.0
        %899 = vmatprep.subr.mxu0 0.0
        %900 = vmatpush2.msra.mxu0 0.0
        %901 = vmatprep.subr.mxu0 0.0
        %902 = vmatpush2.msra.mxu0 0.0
        %903 = vmatprep.subr.mxu0 0.0
        %904 = vmatpush2.msra.mxu0 0.0
        %905 = vmatprep.subr.mxu0 0.0
        %906 = vmatpush2.msra.mxu0 0.0
        %907 = vmatprep.mubr.f32.mxu0 0.0
        %908 = vmatmul.mubr.f32.gmra.mxu0 %v841
        %v909 = vpop.f32.mrf.mxu0
        %v910 = vadd.f32 0.0, %v909
        %v911 = vpop.f32.mrf.mxu0
        %v912 = vadd.f32 0.0, %v911
        %913 = vdwg.mxu0
        %914 = vmatprep.subr.mxu0 0.0
        %915 = vmatpush1.msra.mxu0 0.0
        %916 = vmatprep.subr.mxu0 0.0
        %917 = vmatpush1.msra.mxu0 0.0
        %918 = vmatprep.subr.mxu0 0.0
        %919 = vmatpush1.msra.mxu0 0.0
        %920 = vmatprep.subr.mxu0 0.0
        %921 = vmatpush1.msra.mxu0 0.0
        %922 = vmatprep.subr.mxu0 0.0
        %923 = vmatpush1.msra.mxu0 0.0
        %924 = vmatprep.subr.mxu0 0.0
        %925 = vmatpush1.msra.mxu0 0.0
        %926 = vmatprep.subr.mxu0 0.0
        %927 = vmatpush1.msra.mxu0 0.0
        %928 = vmatprep.subr.mxu0 0.0
        %929 = vmatpush1.msra.mxu0 0.0
        %930 = vmatprep.subr.mxu0 %v835
        %931 = vmatpush1.msra.mxu0 %v834
        %932 = vmatprep.subr.mxu0 %v827
        %933 = vmatpush1.msra.mxu0 %v826
        %934 = vmatprep.subr.mxu0 %v819
        %935 = vmatpush1.msra.mxu0 %v818
        %936 = vmatprep.subr.mxu0 %v811
        %937 = vmatpush1.msra.mxu0 %v810
        %938 = vmatprep.subr.mxu0 %v803
        %939 = vmatpush1.msra.mxu0 %v802
        %940 = vmatprep.subr.mxu0 %v795
        %941 = vmatpush1.msra.mxu0 %v794
        %942 = vmatprep.subr.mxu0 %v787
        %943 = vmatpush1.msra.mxu0 %v786
        %944 = vmatprep.subr.mxu0 %v779
        %945 = vmatpush1.msra.mxu0 %v778
        %946 = vmatprep.subr.mxu0 0.0
        %947 = vmatpush2.msra.mxu0 0.0
        %948 = vmatprep.subr.mxu0 0.0
        %949 = vmatpush2.msra.mxu0 0.0
        %950 = vmatprep.subr.mxu0 0.0
        %951 = vmatpush2.msra.mxu0 0.0
        %952 = vmatprep.subr.mxu0 0.0
        %953 = vmatpush2.msra.mxu0 0.0
        %954 = vmatprep.subr.mxu0 0.0
        %955 = vmatpush2.msra.mxu0 0.0
        %956 = vmatprep.subr.mxu0 0.0
        %957 = vmatpush2.msra.mxu0 0.0
        %958 = vmatprep.subr.mxu0 0.0
        %959 = vmatpush2.msra.mxu0 0.0
        %960 = vmatprep.subr.mxu0 0.0
        %961 = vmatpush2.msra.mxu0 0.0
        %962 = vmatprep.subr.mxu0 0.0
        %963 = vmatpush2.msra.mxu0 0.0
        %964 = vmatprep.subr.mxu0 0.0
        %965 = vmatpush2.msra.mxu0 0.0
        %966 = vmatprep.subr.mxu0 0.0
        %967 = vmatpush2.msra.mxu0 0.0
        %968 = vmatprep.subr.mxu0 0.0
        %969 = vmatpush2.msra.mxu0 0.0
        %970 = vmatprep.subr.mxu0 0.0
        %971 = vmatpush2.msra.mxu0 0.0
        %972 = vmatprep.subr.mxu0 0.0
        %973 = vmatpush2.msra.mxu0 0.0
        %974 = vmatprep.subr.mxu0 0.0
        %975 = vmatpush2.msra.mxu0 0.0
        %976 = vmatprep.subr.mxu0 0.0
        %977 = vmatpush2.msra.mxu0 0.0
        %978 = vmatprep.mubr.f32.mxu0 0.0
        %979 = vmatmul.mubr.f32.gmra.mxu0 %v841
        %v980 = vpop.f32.mrf.mxu0
        %v981 = vadd.f32 0.0, %v980
        %v982 = vpop.f32.mrf.mxu0
        %v983 = vadd.f32 0.0, %v982
        %984 = vdwg.mxu0
        %985 = vmatprep.subr.mxu0 0.0
        %986 = vmatpush1.msra.mxu0 0.0
        %987 = vmatprep.subr.mxu0 0.0
        %988 = vmatpush1.msra.mxu0 0.0
        %989 = vmatprep.subr.mxu0 0.0
        %990 = vmatpush1.msra.mxu0 0.0
        %991 = vmatprep.subr.mxu0 0.0
        %992 = vmatpush1.msra.mxu0 0.0
        %993 = vmatprep.subr.mxu0 0.0
        %994 = vmatpush1.msra.mxu0 0.0
        %995 = vmatprep.subr.mxu0 0.0
        %996 = vmatpush1.msra.mxu0 0.0
        %997 = vmatprep.subr.mxu0 0.0
        %998 = vmatpush1.msra.mxu0 0.0
        %999 = vmatprep.subr.mxu0 0.0
        %1000 = vmatpush1.msra.mxu0 0.0
        %1001 = vmatprep.subr.mxu0 %v837
        %1002 = vmatpush1.msra.mxu0 %v836
        %1003 = vmatprep.subr.mxu0 %v829
        %1004 = vmatpush1.msra.mxu0 %v828
        %1005 = vmatprep.subr.mxu0 %v821
        %1006 = vmatpush1.msra.mxu0 %v820
        %1007 = vmatprep.subr.mxu0 %v813
        %1008 = vmatpush1.msra.mxu0 %v812
        %1009 = vmatprep.subr.mxu0 %v805
        %1010 = vmatpush1.msra.mxu0 %v804
        %1011 = vmatprep.subr.mxu0 %v797
        %1012 = vmatpush1.msra.mxu0 %v796
        %1013 = vmatprep.subr.mxu0 %v789
        %1014 = vmatpush1.msra.mxu0 %v788
        %1015 = vmatprep.subr.mxu0 %v781
        %1016 = vmatpush1.msra.mxu0 %v780
        %1017 = vmatprep.subr.mxu0 0.0
        %1018 = vmatpush2.msra.mxu0 0.0
        %1019 = vmatprep.subr.mxu0 0.0
        %1020 = vmatpush2.msra.mxu0 0.0
        %1021 = vmatprep.subr.mxu0 0.0
        %1022 = vmatpush2.msra.mxu0 0.0
        %1023 = vmatprep.subr.mxu0 0.0
        %1024 = vmatpush2.msra.mxu0 0.0
        %1025 = vmatprep.subr.mxu0 0.0
        %1026 = vmatpush2.msra.mxu0 0.0
        %1027 = vmatprep.subr.mxu0 0.0
        %1028 = vmatpush2.msra.mxu0 0.0
        %1029 = vmatprep.subr.mxu0 0.0
        %1030 = vmatpush2.msra.mxu0 0.0
        %1031 = vmatprep.subr.mxu0 0.0
        %1032 = vmatpush2.msra.mxu0 0.0
        %1033 = vmatprep.subr.mxu0 0.0
        %1034 = vmatpush2.msra.mxu0 0.0
        %1035 = vmatprep.subr.mxu0 0.0
        %1036 = vmatpush2.msra.mxu0 0.0
        %1037 = vmatprep.subr.mxu0 0.0
        %1038 = vmatpush2.msra.mxu0 0.0
        %1039 = vmatprep.subr.mxu0 0.0
        %1040 = vmatpush2.msra.mxu0 0.0
        %1041 = vmatprep.subr.mxu0 0.0
        %1042 = vmatpush2.msra.mxu0 0.0
        %1043 = vmatprep.subr.mxu0 0.0
        %1044 = vmatpush2.msra.mxu0 0.0
        %1045 = vmatprep.subr.mxu0 0.0
        %1046 = vmatpush2.msra.mxu0 0.0
        %1047 = vmatprep.subr.mxu0 0.0
        %1048 = vmatpush2.msra.mxu0 0.0
        %1049 = vmatprep.mubr.f32.mxu0 0.0
        %1050 = vmatmul.mubr.f32.gmra.mxu0 %v841
        %v1051 = vpop.f32.mrf.mxu0
        %v1052 = vadd.f32 0.0, %v1051
        %v1053 = vpop.f32.mrf.mxu0
        %v1054 = vadd.f32 0.0, %v1053
        %1055 = vdwg.mxu0
        %1056 = vmatprep.subr.mxu0 0.0
        %1057 = vmatpush1.msra.mxu0 0.0
        %1058 = vmatprep.subr.mxu0 0.0
        %1059 = vmatpush1.msra.mxu0 0.0
        %1060 = vmatprep.subr.mxu0 0.0
        %1061 = vmatpush1.msra.mxu0 0.0
        %1062 = vmatprep.subr.mxu0 0.0
        %1063 = vmatpush1.msra.mxu0 0.0
        %1064 = vmatprep.subr.mxu0 0.0
        %1065 = vmatpush1.msra.mxu0 0.0
        %1066 = vmatprep.subr.mxu0 0.0
        %1067 = vmatpush1.msra.mxu0 0.0
        %1068 = vmatprep.subr.mxu0 0.0
        %1069 = vmatpush1.msra.mxu0 0.0
        %1070 = vmatprep.subr.mxu0 0.0
        %1071 = vmatpush1.msra.mxu0 0.0
        %1072 = vmatprep.subr.mxu0 %v839
        %1073 = vmatpush1.msra.mxu0 %v838
        %1074 = vmatprep.subr.mxu0 %v831
        %1075 = vmatpush1.msra.mxu0 %v830
        %1076 = vmatprep.subr.mxu0 %v823
        %1077 = vmatpush1.msra.mxu0 %v822
        %1078 = vmatprep.subr.mxu0 %v815
        %1079 = vmatpush1.msra.mxu0 %v814
        %1080 = vmatprep.subr.mxu0 %v807
        %1081 = vmatpush1.msra.mxu0 %v806
        %1082 = vmatprep.subr.mxu0 %v799
        %1083 = vmatpush1.msra.mxu0 %v798
        %1084 = vmatprep.subr.mxu0 %v791
        %1085 = vmatpush1.msra.mxu0 %v790
        %1086 = vmatprep.subr.mxu0 %v783
        %1087 = vmatpush1.msra.mxu0 %v782
        %1088 = vmatprep.subr.mxu0 0.0
        %1089 = vmatpush2.msra.mxu0 0.0
        %1090 = vmatprep.subr.mxu0 0.0
        %1091 = vmatpush2.msra.mxu0 0.0
        %1092 = vmatprep.subr.mxu0 0.0
        %1093 = vmatpush2.msra.mxu0 0.0
        %1094 = vmatprep.subr.mxu0 0.0
        %1095 = vmatpush2.msra.mxu0 0.0
        %1096 = vmatprep.subr.mxu0 0.0
        %1097 = vmatpush2.msra.mxu0 0.0
        %1098 = vmatprep.subr.mxu0 0.0
        %1099 = vmatpush2.msra.mxu0 0.0
        %1100 = vmatprep.subr.mxu0 0.0
        %1101 = vmatpush2.msra.mxu0 0.0
        %1102 = vmatprep.subr.mxu0 0.0
        %1103 = vmatpush2.msra.mxu0 0.0
        %1104 = vmatprep.subr.mxu0 0.0
        %1105 = vmatpush2.msra.mxu0 0.0
        %1106 = vmatprep.subr.mxu0 0.0
        %1107 = vmatpush2.msra.mxu0 0.0
        %1108 = vmatprep.subr.mxu0 0.0
        %1109 = vmatpush2.msra.mxu0 0.0
        %1110 = vmatprep.subr.mxu0 0.0
        %1111 = vmatpush2.msra.mxu0 0.0
        %1112 = vmatprep.subr.mxu0 0.0
        %1113 = vmatpush2.msra.mxu0 0.0
        %1114 = vmatprep.subr.mxu0 0.0
        %1115 = vmatpush2.msra.mxu0 0.0
        %1116 = vmatprep.subr.mxu0 0.0
        %1117 = vmatpush2.msra.mxu0 0.0
        %1118 = vmatprep.subr.mxu0 0.0
        %1119 = vmatpush2.msra.mxu0 0.0
        %1120 = vmatprep.mubr.f32.mxu0 0.0
        %1121 = vmatmul.mubr.f32.gmra.mxu0 %v841
        %v1122 = vpop.f32.mrf.mxu0
        %v1123 = vadd.f32 0.0, %v1122
        %v1124 = vpop.f32.mrf.mxu0
        %v1125 = vadd.f32 0.0, %v1124
        %1126 = vdwg.mxu0
        %v1128 = vsel %vm714, %v775, 0
        %1130 = vmatprep.subr.mxu0 0.0
        %1131 = vmatpush1.msra.mxu0 0.0
        %1132 = vmatprep.subr.mxu0 0.0
        %1133 = vmatpush1.msra.mxu0 0.0
        %1134 = vmatprep.subr.mxu0 0.0
        %1135 = vmatpush1.msra.mxu0 0.0
        %1136 = vmatprep.subr.mxu0 0.0
        %1137 = vmatpush1.msra.mxu0 0.0
        %1138 = vmatprep.subr.mxu0 0.0
        %1139 = vmatpush1.msra.mxu0 0.0
        %1140 = vmatprep.subr.mxu0 0.0
        %1141 = vmatpush1.msra.mxu0 0.0
        %1142 = vmatprep.subr.mxu0 0.0
        %1143 = vmatpush1.msra.mxu0 0.0
        %1144 = vmatprep.subr.mxu0 0.0
        %1145 = vmatpush1.msra.mxu0 0.0
        %1146 = vmatprep.subr.mxu0 %v833
        %1147 = vmatpush1.msra.mxu0 %v832
        %1148 = vmatprep.subr.mxu0 %v825
        %1149 = vmatpush1.msra.mxu0 %v824
        %1150 = vmatprep.subr.mxu0 %v817
        %1151 = vmatpush1.msra.mxu0 %v816
        %1152 = vmatprep.subr.mxu0 %v809
        %1153 = vmatpush1.msra.mxu0 %v808
        %1154 = vmatprep.subr.mxu0 %v801
        %1155 = vmatpush1.msra.mxu0 %v800
        %1156 = vmatprep.subr.mxu0 %v793
        %1157 = vmatpush1.msra.mxu0 %v792
        %1158 = vmatprep.subr.mxu0 %v785
        %1159 = vmatpush1.msra.mxu0 %v784
        %1160 = vmatprep.subr.mxu0 %v777
        %1161 = vmatpush1.msra.mxu0 %v776
        %1162 = vmatprep.subr.mxu0 0.0
        %1163 = vmatpush2.msra.mxu0 0.0
        %1164 = vmatprep.subr.mxu0 0.0
        %1165 = vmatpush2.msra.mxu0 0.0
        %1166 = vmatprep.subr.mxu0 0.0
        %1167 = vmatpush2.msra.mxu0 0.0
        %1168 = vmatprep.subr.mxu0 0.0
        %1169 = vmatpush2.msra.mxu0 0.0
        %1170 = vmatprep.subr.mxu0 0.0
        %1171 = vmatpush2.msra.mxu0 0.0
        %1172 = vmatprep.subr.mxu0 0.0
        %1173 = vmatpush2.msra.mxu0 0.0
        %1174 = vmatprep.subr.mxu0 0.0
        %1175 = vmatpush2.msra.mxu0 0.0
        %1176 = vmatprep.subr.mxu0 0.0
        %1177 = vmatpush2.msra.mxu0 0.0
        %1178 = vmatprep.subr.mxu0 0.0
        %1179 = vmatpush2.msra.mxu0 0.0
        %1180 = vmatprep.subr.mxu0 0.0
        %1181 = vmatpush2.msra.mxu0 0.0
        %1182 = vmatprep.subr.mxu0 0.0
        %1183 = vmatpush2.msra.mxu0 0.0
        %1184 = vmatprep.subr.mxu0 0.0
        %1185 = vmatpush2.msra.mxu0 0.0
        %1186 = vmatprep.subr.mxu0 0.0
        %1187 = vmatpush2.msra.mxu0 0.0
        %1188 = vmatprep.subr.mxu0 0.0
        %1189 = vmatpush2.msra.mxu0 0.0
        %1190 = vmatprep.subr.mxu0 0.0
        %1191 = vmatpush2.msra.mxu0 0.0
        %1192 = vmatprep.subr.mxu0 0.0
        %1193 = vmatpush2.msra.mxu0 0.0
        %1194 = vmatprep.mubr.f32.mxu0 0.0
        %1195 = vmatmul.mubr.f32.gmra.mxu0 %v1128
        %v1196 = vpop.f32.mrf.mxu0
        %v1197 = vadd.f32 0.0, %v1196
        %v1198 = vpop.f32.mrf.mxu0
        %v1199 = vadd.f32 0.0, %v1198
        %1200 = vdwg.mxu0
        %1201 = vmatprep.subr.mxu0 0.0
        %1202 = vmatpush1.msra.mxu0 0.0
        %1203 = vmatprep.subr.mxu0 0.0
        %1204 = vmatpush1.msra.mxu0 0.0
        %1205 = vmatprep.subr.mxu0 0.0
        %1206 = vmatpush1.msra.mxu0 0.0
        %1207 = vmatprep.subr.mxu0 0.0
        %1208 = vmatpush1.msra.mxu0 0.0
        %1209 = vmatprep.subr.mxu0 0.0
        %1210 = vmatpush1.msra.mxu0 0.0
        %1211 = vmatprep.subr.mxu0 0.0
        %1212 = vmatpush1.msra.mxu0 0.0
        %1213 = vmatprep.subr.mxu0 0.0
        %1214 = vmatpush1.msra.mxu0 0.0
        %1215 = vmatprep.subr.mxu0 0.0
        %1216 = vmatpush1.msra.mxu0 0.0
        %1217 = vmatprep.subr.mxu0 %v835
        %1218 = vmatpush1.msra.mxu0 %v834
        %1219 = vmatprep.subr.mxu0 %v827
        %1220 = vmatpush1.msra.mxu0 %v826
        %1221 = vmatprep.subr.mxu0 %v819
        %1222 = vmatpush1.msra.mxu0 %v818
        %1223 = vmatprep.subr.mxu0 %v811
        %1224 = vmatpush1.msra.mxu0 %v810
        %1225 = vmatprep.subr.mxu0 %v803
        %1226 = vmatpush1.msra.mxu0 %v802
        %1227 = vmatprep.subr.mxu0 %v795
        %1228 = vmatpush1.msra.mxu0 %v794
        %1229 = vmatprep.subr.mxu0 %v787
        %1230 = vmatpush1.msra.mxu0 %v786
        %1231 = vmatprep.subr.mxu0 %v779
        %1232 = vmatpush1.msra.mxu0 %v778
        %1233 = vmatprep.subr.mxu0 0.0
        %1234 = vmatpush2.msra.mxu0 0.0
        %1235 = vmatprep.subr.mxu0 0.0
        %1236 = vmatpush2.msra.mxu0 0.0
        %1237 = vmatprep.subr.mxu0 0.0
        %1238 = vmatpush2.msra.mxu0 0.0
        %1239 = vmatprep.subr.mxu0 0.0
        %1240 = vmatpush2.msra.mxu0 0.0
        %1241 = vmatprep.subr.mxu0 0.0
        %1242 = vmatpush2.msra.mxu0 0.0
        %1243 = vmatprep.subr.mxu0 0.0
        %1244 = vmatpush2.msra.mxu0 0.0
        %1245 = vmatprep.subr.mxu0 0.0
        %1246 = vmatpush2.msra.mxu0 0.0
        %1247 = vmatprep.subr.mxu0 0.0
        %1248 = vmatpush2.msra.mxu0 0.0
        %1249 = vmatprep.subr.mxu0 0.0
        %1250 = vmatpush2.msra.mxu0 0.0
        %1251 = vmatprep.subr.mxu0 0.0
        %1252 = vmatpush2.msra.mxu0 0.0
        %1253 = vmatprep.subr.mxu0 0.0
        %1254 = vmatpush2.msra.mxu0 0.0
        %1255 = vmatprep.subr.mxu0 0.0
        %1256 = vmatpush2.msra.mxu0 0.0
        %1257 = vmatprep.subr.mxu0 0.0
        %1258 = vmatpush2.msra.mxu0 0.0
        %1259 = vmatprep.subr.mxu0 0.0
        %1260 = vmatpush2.msra.mxu0 0.0
        %1261 = vmatprep.subr.mxu0 0.0
        %1262 = vmatpush2.msra.mxu0 0.0
        %1263 = vmatprep.subr.mxu0 0.0
        %1264 = vmatpush2.msra.mxu0 0.0
        %1265 = vmatprep.mubr.f32.mxu0 0.0
        %1266 = vmatmul.mubr.f32.gmra.mxu0 %v1128
        %v1267 = vpop.f32.mrf.mxu0
        %v1268 = vadd.f32 0.0, %v1267
        %v1269 = vpop.f32.mrf.mxu0
        %v1270 = vadd.f32 0.0, %v1269
        %1271 = vdwg.mxu0
        %1272 = vmatprep.subr.mxu0 0.0
        %1273 = vmatpush1.msra.mxu0 0.0
        %1274 = vmatprep.subr.mxu0 0.0
        %1275 = vmatpush1.msra.mxu0 0.0
        %1276 = vmatprep.subr.mxu0 0.0
        %1277 = vmatpush1.msra.mxu0 0.0
        %1278 = vmatprep.subr.mxu0 0.0
        %1279 = vmatpush1.msra.mxu0 0.0
        %1280 = vmatprep.subr.mxu0 0.0
        %1281 = vmatpush1.msra.mxu0 0.0
        %1282 = vmatprep.subr.mxu0 0.0
        %1283 = vmatpush1.msra.mxu0 0.0
        %1284 = vmatprep.subr.mxu0 0.0
        %1285 = vmatpush1.msra.mxu0 0.0
        %1286 = vmatprep.subr.mxu0 0.0
        %1287 = vmatpush1.msra.mxu0 0.0
        %1288 = vmatprep.subr.mxu0 %v837
        %1289 = vmatpush1.msra.mxu0 %v836
        %1290 = vmatprep.subr.mxu0 %v829
        %1291 = vmatpush1.msra.mxu0 %v828
        %1292 = vmatprep.subr.mxu0 %v821
        %1293 = vmatpush1.msra.mxu0 %v820
        %1294 = vmatprep.subr.mxu0 %v813
        %1295 = vmatpush1.msra.mxu0 %v812
        %1296 = vmatprep.subr.mxu0 %v805
        %1297 = vmatpush1.msra.mxu0 %v804
        %1298 = vmatprep.subr.mxu0 %v797
        %1299 = vmatpush1.msra.mxu0 %v796
        %1300 = vmatprep.subr.mxu0 %v789
        %1301 = vmatpush1.msra.mxu0 %v788
        %1302 = vmatprep.subr.mxu0 %v781
        %1303 = vmatpush1.msra.mxu0 %v780
        %1304 = vmatprep.subr.mxu0 0.0
        %1305 = vmatpush2.msra.mxu0 0.0
        %1306 = vmatprep.subr.mxu0 0.0
        %1307 = vmatpush2.msra.mxu0 0.0
        %1308 = vmatprep.subr.mxu0 0.0
        %1309 = vmatpush2.msra.mxu0 0.0
        %1310 = vmatprep.subr.mxu0 0.0
        %1311 = vmatpush2.msra.mxu0 0.0
        %1312 = vmatprep.subr.mxu0 0.0
        %1313 = vmatpush2.msra.mxu0 0.0
        %1314 = vmatprep.subr.mxu0 0.0
        %1315 = vmatpush2.msra.mxu0 0.0
        %1316 = vmatprep.subr.mxu0 0.0
        %1317 = vmatpush2.msra.mxu0 0.0
        %1318 = vmatprep.subr.mxu0 0.0
        %1319 = vmatpush2.msra.mxu0 0.0
        %1320 = vmatprep.subr.mxu0 0.0
        %1321 = vmatpush2.msra.mxu0 0.0
        %1322 = vmatprep.subr.mxu0 0.0
        %1323 = vmatpush2.msra.mxu0 0.0
        %1324 = vmatprep.subr.mxu0 0.0
        %1325 = vmatpush2.msra.mxu0 0.0
        %1326 = vmatprep.subr.mxu0 0.0
        %1327 = vmatpush2.msra.mxu0 0.0
        %1328 = vmatprep.subr.mxu0 0.0
        %1329 = vmatpush2.msra.mxu0 0.0
        %1330 = vmatprep.subr.mxu0 0.0
        %1331 = vmatpush2.msra.mxu0 0.0
        %1332 = vmatprep.subr.mxu0 0.0
        %1333 = vmatpush2.msra.mxu0 0.0
        %1334 = vmatprep.subr.mxu0 0.0
        %1335 = vmatpush2.msra.mxu0 0.0
        %1336 = vmatprep.mubr.f32.mxu0 0.0
        %1337 = vmatmul.mubr.f32.gmra.mxu0 %v1128
        %v1338 = vpop.f32.mrf.mxu0
        %v1339 = vadd.f32 0.0, %v1338
        %v1340 = vpop.f32.mrf.mxu0
        %v1341 = vadd.f32 0.0, %v1340
        %1342 = vdwg.mxu0
        %1343 = vmatprep.subr.mxu0 0.0
        %1344 = vmatpush1.msra.mxu0 0.0
        %1345 = vmatprep.subr.mxu0 0.0
        %1346 = vmatpush1.msra.mxu0 0.0
        %1347 = vmatprep.subr.mxu0 0.0
        %1348 = vmatpush1.msra.mxu0 0.0
        %1349 = vmatprep.subr.mxu0 0.0
        %1350 = vmatpush1.msra.mxu0 0.0
        %1351 = vmatprep.subr.mxu0 0.0
        %1352 = vmatpush1.msra.mxu0 0.0
        %1353 = vmatprep.subr.mxu0 0.0
        %1354 = vmatpush1.msra.mxu0 0.0
        %1355 = vmatprep.subr.mxu0 0.0
        %1356 = vmatpush1.msra.mxu0 0.0
        %1357 = vmatprep.subr.mxu0 0.0
        %1358 = vmatpush1.msra.mxu0 0.0
        %1359 = vmatprep.subr.mxu0 %v839
        %1360 = vmatpush1.msra.mxu0 %v838
        %1361 = vmatprep.subr.mxu0 %v831
        %1362 = vmatpush1.msra.mxu0 %v830
        %1363 = vmatprep.subr.mxu0 %v823
        %1364 = vmatpush1.msra.mxu0 %v822
        %1365 = vmatprep.subr.mxu0 %v815
        %1366 = vmatpush1.msra.mxu0 %v814
        %1367 = vmatprep.subr.mxu0 %v807
        %1368 = vmatpush1.msra.mxu0 %v806
        %1369 = vmatprep.subr.mxu0 %v799
        %1370 = vmatpush1.msra.mxu0 %v798
        %1371 = vmatprep.subr.mxu0 %v791
        %1372 = vmatpush1.msra.mxu0 %v790
        %1373 = vmatprep.subr.mxu0 %v783
        %1374 = vmatpush1.msra.mxu0 %v782
        %1375 = vmatprep.subr.mxu0 0.0
        %1376 = vmatpush2.msra.mxu0 0.0
        %1377 = vmatprep.subr.mxu0 0.0
        %1378 = vmatpush2.msra.mxu0 0.0
        %1379 = vmatprep.subr.mxu0 0.0
        %1380 = vmatpush2.msra.mxu0 0.0
        %1381 = vmatprep.subr.mxu0 0.0
        %1382 = vmatpush2.msra.mxu0 0.0
        %1383 = vmatprep.subr.mxu0 0.0
        %1384 = vmatpush2.msra.mxu0 0.0
        %1385 = vmatprep.subr.mxu0 0.0
        %1386 = vmatpush2.msra.mxu0 0.0
        %1387 = vmatprep.subr.mxu0 0.0
        %1388 = vmatpush2.msra.mxu0 0.0
        %1389 = vmatprep.subr.mxu0 0.0
        %1390 = vmatpush2.msra.mxu0 0.0
        %1391 = vmatprep.subr.mxu0 0.0
        %1392 = vmatpush2.msra.mxu0 0.0
        %1393 = vmatprep.subr.mxu0 0.0
        %1394 = vmatpush2.msra.mxu0 0.0
        %1395 = vmatprep.subr.mxu0 0.0
        %1396 = vmatpush2.msra.mxu0 0.0
        %1397 = vmatprep.subr.mxu0 0.0
        %1398 = vmatpush2.msra.mxu0 0.0
        %1399 = vmatprep.subr.mxu0 0.0
        %1400 = vmatpush2.msra.mxu0 0.0
        %1401 = vmatprep.subr.mxu0 0.0
        %1402 = vmatpush2.msra.mxu0 0.0
        %1403 = vmatprep.subr.mxu0 0.0
        %1404 = vmatpush2.msra.mxu0 0.0
        %1405 = vmatprep.subr.mxu0 0.0
        %1406 = vmatpush2.msra.mxu0 0.0
        %1407 = vmatprep.mubr.f32.mxu0 0.0
        %1408 = vmatmul.mubr.f32.gmra.mxu0 %v1128
        %v1409 = vpop.f32.mrf.mxu0
        %v1410 = vadd.f32 0.0, %v1409
        %v1411 = vpop.f32.mrf.mxu0
        %v1412 = vadd.f32 0.0, %v1411
        %1413 = vdwg.mxu0
        %v1414 = vld [vmem:[#allocation12] sm:$0xff]
        %v1415 = vld [vmem:[#allocation12 + $0x8] sm:$0xff]
        %v1416 = vld [vmem:[#allocation12 + $0x10] sm:$0xff]
        %v1417 = vld [vmem:[#allocation12 + $0x18] sm:$0xff]
        %v1418 = vld [vmem:[#allocation12 + $0x20] sm:$0xff]
        %v1419 = vld [vmem:[#allocation12 + $0x28] sm:$0xff]
        %v1420 = vld [vmem:[#allocation12 + $0x30] sm:$0xff]
        %v1421 = vld [vmem:[#allocation12 + $0x38] sm:$0xff]
        %v1422 = vld [vmem:[#allocation12 + $0x40] sm:$0xff]
        %v1423 = vld [vmem:[#allocation12 + $0x48] sm:$0xff]
        %v1424 = vld [vmem:[#allocation12 + $0x50] sm:$0xff]
        %v1425 = vld [vmem:[#allocation12 + $0x58] sm:$0xff]
        %v1426 = vld [vmem:[#allocation12 + $0x60] sm:$0xff]
        %v1427 = vld [vmem:[#allocation12 + $0x68] sm:$0xff]
        %v1428 = vld [vmem:[#allocation12 + $0x70] sm:$0xff]
        %v1429 = vld [vmem:[#allocation12 + $0x78] sm:$0xff]
        %1431 = vrot.lane.b32.xlu0 %v753, 64
        %v1432 = vpop.permute.xlu0 %1431
        %vm1433 = vcmask 130048
        %v1434 = vsel %vm1433, %v1432, 0
        %1436 = vmatprep.subr.mxu0 0.0
        %1437 = vmatpush1.msra.mxu0 0.0
        %1438 = vmatprep.subr.mxu0 0.0
        %1439 = vmatpush1.msra.mxu0 0.0
        %1440 = vmatprep.subr.mxu0 0.0
        %1441 = vmatpush1.msra.mxu0 0.0
        %1442 = vmatprep.subr.mxu0 0.0
        %1443 = vmatpush1.msra.mxu0 0.0
        %1444 = vmatprep.subr.mxu0 0.0
        %1445 = vmatpush1.msra.mxu0 0.0
        %1446 = vmatprep.subr.mxu0 0.0
        %1447 = vmatpush1.msra.mxu0 0.0
        %1448 = vmatprep.subr.mxu0 0.0
        %1449 = vmatpush1.msra.mxu0 0.0
        %1450 = vmatprep.subr.mxu0 0.0
        %1451 = vmatpush1.msra.mxu0 0.0
        %1452 = vmatprep.subr.mxu0 0.0
        %1453 = vmatpush1.msra.mxu0 0.0
        %1454 = vmatprep.subr.mxu0 0.0
        %1455 = vmatpush1.msra.mxu0 0.0
        %1456 = vmatprep.subr.mxu0 0.0
        %1457 = vmatpush1.msra.mxu0 0.0
        %1458 = vmatprep.subr.mxu0 0.0
        %1459 = vmatpush1.msra.mxu0 0.0
        %1460 = vmatprep.subr.mxu0 0.0
        %1461 = vmatpush1.msra.mxu0 0.0
        %1462 = vmatprep.subr.mxu0 0.0
        %1463 = vmatpush1.msra.mxu0 0.0
        %1464 = vmatprep.subr.mxu0 %v1423
        %1465 = vmatpush1.msra.mxu0 %v1422
        %1466 = vmatprep.subr.mxu0 %v1415
        %1467 = vmatpush1.msra.mxu0 %v1414
        %1468 = vmatprep.subr.mxu0 0.0
        %1469 = vmatpush2.msra.mxu0 0.0
        %1470 = vmatprep.subr.mxu0 0.0
        %1471 = vmatpush2.msra.mxu0 0.0
        %1472 = vmatprep.subr.mxu0 0.0
        %1473 = vmatpush2.msra.mxu0 0.0
        %1474 = vmatprep.subr.mxu0 0.0
        %1475 = vmatpush2.msra.mxu0 0.0
        %1476 = vmatprep.subr.mxu0 0.0
        %1477 = vmatpush2.msra.mxu0 0.0
        %1478 = vmatprep.subr.mxu0 0.0
        %1479 = vmatpush2.msra.mxu0 0.0
        %1480 = vmatprep.subr.mxu0 0.0
        %1481 = vmatpush2.msra.mxu0 0.0
        %1482 = vmatprep.subr.mxu0 0.0
        %1483 = vmatpush2.msra.mxu0 0.0
        %1484 = vmatprep.subr.mxu0 0.0
        %1485 = vmatpush2.msra.mxu0 0.0
        %1486 = vmatprep.subr.mxu0 0.0
        %1487 = vmatpush2.msra.mxu0 0.0
        %1488 = vmatprep.subr.mxu0 0.0
        %1489 = vmatpush2.msra.mxu0 0.0
        %1490 = vmatprep.subr.mxu0 0.0
        %1491 = vmatpush2.msra.mxu0 0.0
        %1492 = vmatprep.subr.mxu0 0.0
        %1493 = vmatpush2.msra.mxu0 0.0
        %1494 = vmatprep.subr.mxu0 0.0
        %1495 = vmatpush2.msra.mxu0 0.0
        %1496 = vmatprep.subr.mxu0 0.0
        %1497 = vmatpush2.msra.mxu0 0.0
        %1498 = vmatprep.subr.mxu0 0.0
        %1499 = vmatpush2.msra.mxu0 0.0
        %1500 = vmatprep.mubr.f32.mxu0 0.0
        %1501 = vmatmul.mubr.f32.gmra.mxu0 %v1434
        %v1502 = vpop.f32.mrf.mxu0
        %v1503 = vadd.f32 0.0, %v1502
        %v1504 = vpop.f32.mrf.mxu0
        %v1505 = vadd.f32 0.0, %v1504
        %1506 = vdwg.mxu0
        %1507 = vmatprep.subr.mxu0 0.0
        %1508 = vmatpush1.msra.mxu0 0.0
        %1509 = vmatprep.subr.mxu0 0.0
        %1510 = vmatpush1.msra.mxu0 0.0
        %1511 = vmatprep.subr.mxu0 0.0
        %1512 = vmatpush1.msra.mxu0 0.0
        %1513 = vmatprep.subr.mxu0 0.0
        %1514 = vmatpush1.msra.mxu0 0.0
        %1515 = vmatprep.subr.mxu0 0.0
        %1516 = vmatpush1.msra.mxu0 0.0
        %1517 = vmatprep.subr.mxu0 0.0
        %1518 = vmatpush1.msra.mxu0 0.0
        %1519 = vmatprep.subr.mxu0 0.0
        %1520 = vmatpush1.msra.mxu0 0.0
        %1521 = vmatprep.subr.mxu0 0.0
        %1522 = vmatpush1.msra.mxu0 0.0
        %1523 = vmatprep.subr.mxu0 0.0
        %1524 = vmatpush1.msra.mxu0 0.0
        %1525 = vmatprep.subr.mxu0 0.0
        %1526 = vmatpush1.msra.mxu0 0.0
        %1527 = vmatprep.subr.mxu0 0.0
        %1528 = vmatpush1.msra.mxu0 0.0
        %1529 = vmatprep.subr.mxu0 0.0
        %1530 = vmatpush1.msra.mxu0 0.0
        %1531 = vmatprep.subr.mxu0 0.0
        %1532 = vmatpush1.msra.mxu0 0.0
        %1533 = vmatprep.subr.mxu0 0.0
        %1534 = vmatpush1.msra.mxu0 0.0
        %1535 = vmatprep.subr.mxu0 %v1425
        %1536 = vmatpush1.msra.mxu0 %v1424
        %1537 = vmatprep.subr.mxu0 %v1417
        %1538 = vmatpush1.msra.mxu0 %v1416
        %1539 = vmatprep.subr.mxu0 0.0
        %1540 = vmatpush2.msra.mxu0 0.0
        %1541 = vmatprep.subr.mxu0 0.0
        %1542 = vmatpush2.msra.mxu0 0.0
        %1543 = vmatprep.subr.mxu0 0.0
        %1544 = vmatpush2.msra.mxu0 0.0
        %1545 = vmatprep.subr.mxu0 0.0
        %1546 = vmatpush2.msra.mxu0 0.0
        %1547 = vmatprep.subr.mxu0 0.0
        %1548 = vmatpush2.msra.mxu0 0.0
        %1549 = vmatprep.subr.mxu0 0.0
        %1550 = vmatpush2.msra.mxu0 0.0
        %1551 = vmatprep.subr.mxu0 0.0
        %1552 = vmatpush2.msra.mxu0 0.0
        %1553 = vmatprep.subr.mxu0 0.0
        %1554 = vmatpush2.msra.mxu0 0.0
        %1555 = vmatprep.subr.mxu0 0.0
        %1556 = vmatpush2.msra.mxu0 0.0
        %1557 = vmatprep.subr.mxu0 0.0
        %1558 = vmatpush2.msra.mxu0 0.0
        %1559 = vmatprep.subr.mxu0 0.0
        %1560 = vmatpush2.msra.mxu0 0.0
        %1561 = vmatprep.subr.mxu0 0.0
        %1562 = vmatpush2.msra.mxu0 0.0
        %1563 = vmatprep.subr.mxu0 0.0
        %1564 = vmatpush2.msra.mxu0 0.0
        %1565 = vmatprep.subr.mxu0 0.0
        %1566 = vmatpush2.msra.mxu0 0.0
        %1567 = vmatprep.subr.mxu0 0.0
        %1568 = vmatpush2.msra.mxu0 0.0
        %1569 = vmatprep.subr.mxu0 0.0
        %1570 = vmatpush2.msra.mxu0 0.0
        %1571 = vmatprep.mubr.f32.mxu0 0.0
        %1572 = vmatmul.mubr.f32.gmra.mxu0 %v1434
        %v1573 = vpop.f32.mrf.mxu0
        %v1574 = vadd.f32 0.0, %v1573
        %v1575 = vpop.f32.mrf.mxu0
        %v1576 = vadd.f32 0.0, %v1575
        %1577 = vdwg.mxu0
        %1578 = vmatprep.subr.mxu0 0.0
        %1579 = vmatpush1.msra.mxu0 0.0
        %1580 = vmatprep.subr.mxu0 0.0
        %1581 = vmatpush1.msra.mxu0 0.0
        %1582 = vmatprep.subr.mxu0 0.0
        %1583 = vmatpush1.msra.mxu0 0.0
        %1584 = vmatprep.subr.mxu0 0.0
        %1585 = vmatpush1.msra.mxu0 0.0
        %1586 = vmatprep.subr.mxu0 0.0
        %1587 = vmatpush1.msra.mxu0 0.0
        %1588 = vmatprep.subr.mxu0 0.0
        %1589 = vmatpush1.msra.mxu0 0.0
        %1590 = vmatprep.subr.mxu0 0.0
        %1591 = vmatpush1.msra.mxu0 0.0
        %1592 = vmatprep.subr.mxu0 0.0
        %1593 = vmatpush1.msra.mxu0 0.0
        %1594 = vmatprep.subr.mxu0 0.0
        %1595 = vmatpush1.msra.mxu0 0.0
        %1596 = vmatprep.subr.mxu0 0.0
        %1597 = vmatpush1.msra.mxu0 0.0
        %1598 = vmatprep.subr.mxu0 0.0
        %1599 = vmatpush1.msra.mxu0 0.0
        %1600 = vmatprep.subr.mxu0 0.0
        %1601 = vmatpush1.msra.mxu0 0.0
        %1602 = vmatprep.subr.mxu0 0.0
        %1603 = vmatpush1.msra.mxu0 0.0
        %1604 = vmatprep.subr.mxu0 0.0
        %1605 = vmatpush1.msra.mxu0 0.0
        %1606 = vmatprep.subr.mxu0 %v1427
        %1607 = vmatpush1.msra.mxu0 %v1426
        %1608 = vmatprep.subr.mxu0 %v1419
        %1609 = vmatpush1.msra.mxu0 %v1418
        %1610 = vmatprep.subr.mxu0 0.0
        %1611 = vmatpush2.msra.mxu0 0.0
        %1612 = vmatprep.subr.mxu0 0.0
        %1613 = vmatpush2.msra.mxu0 0.0
        %1614 = vmatprep.subr.mxu0 0.0
        %1615 = vmatpush2.msra.mxu0 0.0
        %1616 = vmatprep.subr.mxu0 0.0
        %1617 = vmatpush2.msra.mxu0 0.0
        %1618 = vmatprep.subr.mxu0 0.0
        %1619 = vmatpush2.msra.mxu0 0.0
        %1620 = vmatprep.subr.mxu0 0.0
        %1621 = vmatpush2.msra.mxu0 0.0
        %1622 = vmatprep.subr.mxu0 0.0
        %1623 = vmatpush2.msra.mxu0 0.0
        %1624 = vmatprep.subr.mxu0 0.0
        %1625 = vmatpush2.msra.mxu0 0.0
        %1626 = vmatprep.subr.mxu0 0.0
        %1627 = vmatpush2.msra.mxu0 0.0
        %1628 = vmatprep.subr.mxu0 0.0
        %1629 = vmatpush2.msra.mxu0 0.0
        %1630 = vmatprep.subr.mxu0 0.0
        %1631 = vmatpush2.msra.mxu0 0.0
        %1632 = vmatprep.subr.mxu0 0.0
        %1633 = vmatpush2.msra.mxu0 0.0
        %1634 = vmatprep.subr.mxu0 0.0
        %1635 = vmatpush2.msra.mxu0 0.0
        %1636 = vmatprep.subr.mxu0 0.0
        %1637 = vmatpush2.msra.mxu0 0.0
        %1638 = vmatprep.subr.mxu0 0.0
        %1639 = vmatpush2.msra.mxu0 0.0
        %1640 = vmatprep.subr.mxu0 0.0
        %1641 = vmatpush2.msra.mxu0 0.0
        %1642 = vmatprep.mubr.f32.mxu0 0.0
        %1643 = vmatmul.mubr.f32.gmra.mxu0 %v1434
        %v1644 = vpop.f32.mrf.mxu0
        %v1645 = vadd.f32 0.0, %v1644
        %v1646 = vpop.f32.mrf.mxu0
        %v1647 = vadd.f32 0.0, %v1646
        %1648 = vdwg.mxu0
        %1649 = vmatprep.subr.mxu0 0.0
        %1650 = vmatpush1.msra.mxu0 0.0
        %1651 = vmatprep.subr.mxu0 0.0
        %1652 = vmatpush1.msra.mxu0 0.0
        %1653 = vmatprep.subr.mxu0 0.0
        %1654 = vmatpush1.msra.mxu0 0.0
        %1655 = vmatprep.subr.mxu0 0.0
        %1656 = vmatpush1.msra.mxu0 0.0
        %1657 = vmatprep.subr.mxu0 0.0
        %1658 = vmatpush1.msra.mxu0 0.0
        %1659 = vmatprep.subr.mxu0 0.0
        %1660 = vmatpush1.msra.mxu0 0.0
        %1661 = vmatprep.subr.mxu0 0.0
        %1662 = vmatpush1.msra.mxu0 0.0
        %1663 = vmatprep.subr.mxu0 0.0
        %1664 = vmatpush1.msra.mxu0 0.0
        %1665 = vmatprep.subr.mxu0 0.0
        %1666 = vmatpush1.msra.mxu0 0.0
        %1667 = vmatprep.subr.mxu0 0.0
        %1668 = vmatpush1.msra.mxu0 0.0
        %1669 = vmatprep.subr.mxu0 0.0
        %1670 = vmatpush1.msra.mxu0 0.0
        %1671 = vmatprep.subr.mxu0 0.0
        %1672 = vmatpush1.msra.mxu0 0.0
        %1673 = vmatprep.subr.mxu0 0.0
        %1674 = vmatpush1.msra.mxu0 0.0
        %1675 = vmatprep.subr.mxu0 0.0
        %1676 = vmatpush1.msra.mxu0 0.0
        %1677 = vmatprep.subr.mxu0 %v1429
        %1678 = vmatpush1.msra.mxu0 %v1428
        %1679 = vmatprep.subr.mxu0 %v1421
        %1680 = vmatpush1.msra.mxu0 %v1420
        %1681 = vmatprep.subr.mxu0 0.0
        %1682 = vmatpush2.msra.mxu0 0.0
        %1683 = vmatprep.subr.mxu0 0.0
        %1684 = vmatpush2.msra.mxu0 0.0
        %1685 = vmatprep.subr.mxu0 0.0
        %1686 = vmatpush2.msra.mxu0 0.0
        %1687 = vmatprep.subr.mxu0 0.0
        %1688 = vmatpush2.msra.mxu0 0.0
        %1689 = vmatprep.subr.mxu0 0.0
        %1690 = vmatpush2.msra.mxu0 0.0
        %1691 = vmatprep.subr.mxu0 0.0
        %1692 = vmatpush2.msra.mxu0 0.0
        %1693 = vmatprep.subr.mxu0 0.0
        %1694 = vmatpush2.msra.mxu0 0.0
        %1695 = vmatprep.subr.mxu0 0.0
        %1696 = vmatpush2.msra.mxu0 0.0
        %1697 = vmatprep.subr.mxu0 0.0
        %1698 = vmatpush2.msra.mxu0 0.0
        %1699 = vmatprep.subr.mxu0 0.0
        %1700 = vmatpush2.msra.mxu0 0.0
        %1701 = vmatprep.subr.mxu0 0.0
        %1702 = vmatpush2.msra.mxu0 0.0
        %1703 = vmatprep.subr.mxu0 0.0
        %1704 = vmatpush2.msra.mxu0 0.0
        %1705 = vmatprep.subr.mxu0 0.0
        %1706 = vmatpush2.msra.mxu0 0.0
        %1707 = vmatprep.subr.mxu0 0.0
        %1708 = vmatpush2.msra.mxu0 0.0
        %1709 = vmatprep.subr.mxu0 0.0
        %1710 = vmatpush2.msra.mxu0 0.0
        %1711 = vmatprep.subr.mxu0 0.0
        %1712 = vmatpush2.msra.mxu0 0.0
        %1713 = vmatprep.mubr.f32.mxu0 0.0
        %1714 = vmatmul.mubr.f32.gmra.mxu0 %v1434
        %v1715 = vpop.f32.mrf.mxu0
        %v1716 = vadd.f32 0.0, %v1715
        %v1717 = vpop.f32.mrf.mxu0
        %v1718 = vadd.f32 0.0, %v1717
        %1719 = vdwg.mxu0
        %v1720 = vld [vmem:[#allocation9] sm:$0xff]
        %v1722 = vlaneseq
        %v1723 = vshrl.u32 %v1722, 7
        %v1724 = vsub.s32 0, %v1723
        %v1725 = vrot.slane %v1720, %v1724
        %v1726 = vlaneseq
        %v1727 = vshrl.u32 %v1726, 7
        %v1728 = vsub.s32 1, %v1727
        %v1729 = vrot.slane %v1720, %v1728
        %v1730 = vlaneseq
        %v1731 = vshrl.u32 %v1730, 7
        %v1732 = vsub.s32 2, %v1731
        %v1733 = vrot.slane %v1720, %v1732
        %v1734 = vlaneseq
        %v1735 = vshrl.u32 %v1734, 7
        %v1736 = vsub.s32 3, %v1735
        %v1737 = vrot.slane %v1720, %v1736
        %v1738 = vlaneseq
        %v1739 = vshrl.u32 %v1738, 7
        %v1740 = vsub.s32 4, %v1739
        %v1741 = vrot.slane %v1720, %v1740
        %v1742 = vlaneseq
        %v1743 = vshrl.u32 %v1742, 7
        %v1744 = vsub.s32 5, %v1743
        %v1745 = vrot.slane %v1720, %v1744
        %v1746 = vlaneseq
        %v1747 = vshrl.u32 %v1746, 7
        %v1748 = vsub.s32 6, %v1747
        %v1749 = vrot.slane %v1720, %v1748
        %v1750 = vlaneseq
        %v1751 = vshrl.u32 %v1750, 7
        %v1752 = vsub.s32 7, %v1751
        %v1753 = vrot.slane %v1720, %v1752
        %v1762 = vmul.f32 %v910, %v1725
        %v1763 = vmul.f32 %v912, %v1729
        %v1764 = vmul.f32 %v981, %v1733
        %v1765 = vmul.f32 %v983, %v1737
        %v1766 = vmul.f32 %v1052, %v1741
        %v1767 = vmul.f32 %v1054, %v1745
        %v1768 = vmul.f32 %v1123, %v1749
        %v1769 = vmul.f32 %v1125, %v1753
        %v1770 = vmul.f32 %v1762, 1.442695
        %v1771 = vpow.pop %v1770
        %v1772 = vmul.f32 %v1763, 1.442695
        %v1773 = vpow.pop %v1772
        %v1774 = vmul.f32 %v1764, 1.442695
        %v1775 = vpow.pop %v1774
        %v1776 = vmul.f32 %v1765, 1.442695
        %v1777 = vpow.pop %v1776
        %v1778 = vmul.f32 %v1766, 1.442695
        %v1779 = vpow.pop %v1778
        %v1780 = vmul.f32 %v1767, 1.442695
        %v1781 = vpow.pop %v1780
        %v1782 = vmul.f32 %v1768, 1.442695
        %v1783 = vpow.pop %v1782
        %v1784 = vmul.f32 %v1769, 1.442695
        %v1785 = vpow.pop %v1784
        %v1786 = vmul.f32 %v1197, %v1503
        %v1787 = vmul.f32 %v1199, %v1505
        %v1788 = vmul.f32 %v1268, %v1574
        %v1789 = vmul.f32 %v1270, %v1576
        %v1790 = vmul.f32 %v1339, %v1645
        %v1791 = vmul.f32 %v1341, %v1647
        %v1792 = vmul.f32 %v1410, %v1716
        %v1793 = vmul.f32 %v1412, %v1718
        %v1802 = vrot.slane %v1771, 7
        %v1803 = vrot.slane %v1773, 7
        %v1804 = vrot.slane %v1775, 7
        %v1805 = vrot.slane %v1777, 7
        %v1806 = vrot.slane %v1779, 7
        %v1807 = vrot.slane %v1781, 7
        %v1808 = vrot.slane %v1783, 7
        %v1809 = vrot.slane %v1785, 7
        %vm1818 = vcmask 1040384
        %v1819 = vsel %vm1818, 1.0, %v1802
        %v1820 = vsel %vm1818, 1.0, %v1803
        %v1821 = vsel %vm1818, 1.0, %v1804
        %v1822 = vsel %vm1818, 1.0, %v1805
        %v1823 = vsel %vm1818, 1.0, %v1806
        %v1824 = vsel %vm1818, 1.0, %v1807
        %v1825 = vsel %vm1818, 1.0, %v1808
        %v1826 = vsel %vm1818, 1.0, %v1809
        %v1835 = vrot.slane %v1786, 7
        %v1836 = vrot.slane %v1787, 7
        %v1837 = vrot.slane %v1788, 7
        %v1838 = vrot.slane %v1789, 7
        %v1839 = vrot.slane %v1790, 7
        %v1840 = vrot.slane %v1791, 7
        %v1841 = vrot.slane %v1792, 7
        %v1842 = vrot.slane %v1793, 7
        %v1851 = vsel %vm1818, 0.0, %v1835
        %v1852 = vsel %vm1818, 0.0, %v1836
        %v1853 = vsel %vm1818, 0.0, %v1837
        %v1854 = vsel %vm1818, 0.0, %v1838
        %v1855 = vsel %vm1818, 0.0, %v1839
        %v1856 = vsel %vm1818, 0.0, %v1840
        %v1857 = vsel %vm1818, 0.0, %v1841
        %v1858 = vsel %vm1818, 0.0, %v1842
        %v1859 = vmul.f32 %v1771, %v1851
        %v1860 = vmul.f32 %v1773, %v1852
        %v1861 = vmul.f32 %v1775, %v1853
        %v1862 = vmul.f32 %v1777, %v1854
        %v1863 = vmul.f32 %v1779, %v1855
        %v1864 = vmul.f32 %v1781, %v1856
        %v1865 = vmul.f32 %v1783, %v1857
        %v1866 = vmul.f32 %v1785, %v1858
        %v1867 = vadd.f32 %v1859, %v1786
        %v1868 = vadd.f32 %v1860, %v1787
        %v1869 = vadd.f32 %v1861, %v1788
        %v1870 = vadd.f32 %v1862, %v1789
        %v1871 = vadd.f32 %v1863, %v1790
        %v1872 = vadd.f32 %v1864, %v1791
        %v1873 = vadd.f32 %v1865, %v1792
        %v1874 = vadd.f32 %v1866, %v1793
        %v1875 = vmul.f32 %v1771, %v1819
        %v1876 = vmul.f32 %v1773, %v1820
        %v1877 = vmul.f32 %v1775, %v1821
        %v1878 = vmul.f32 %v1777, %v1822
        %v1879 = vmul.f32 %v1779, %v1823
        %v1880 = vmul.f32 %v1781, %v1824
        %v1881 = vmul.f32 %v1783, %v1825
        %v1882 = vmul.f32 %v1785, %v1826
        %v1891 = vrot.slane %v1875, 6
        %v1892 = vrot.slane %v1876, 6
        %v1893 = vrot.slane %v1877, 6
        %v1894 = vrot.slane %v1878, 6
        %v1895 = vrot.slane %v1879, 6
        %v1896 = vrot.slane %v1880, 6
        %v1897 = vrot.slane %v1881, 6
        %v1898 = vrot.slane %v1882, 6
        %vm1907 = vcmask 1041408
        %v1908 = vsel %vm1907, 1.0, %v1891
        %v1909 = vsel %vm1907, 1.0, %v1892
        %v1910 = vsel %vm1907, 1.0, %v1893
        %v1911 = vsel %vm1907, 1.0, %v1894
        %v1912 = vsel %vm1907, 1.0, %v1895
        %v1913 = vsel %vm1907, 1.0, %v1896
        %v1914 = vsel %vm1907, 1.0, %v1897
        %v1915 = vsel %vm1907, 1.0, %v1898
        %v1924 = vrot.slane %v1867, 6
        %v1925 = vrot.slane %v1868, 6
        %v1926 = vrot.slane %v1869, 6
        %v1927 = vrot.slane %v1870, 6
        %v1928 = vrot.slane %v1871, 6
        %v1929 = vrot.slane %v1872, 6
        %v1930 = vrot.slane %v1873, 6
        %v1931 = vrot.slane %v1874, 6
        %v1940 = vsel %vm1907, 0.0, %v1924
        %v1941 = vsel %vm1907, 0.0, %v1925
        %v1942 = vsel %vm1907, 0.0, %v1926
        %v1943 = vsel %vm1907, 0.0, %v1927
        %v1944 = vsel %vm1907, 0.0, %v1928
        %v1945 = vsel %vm1907, 0.0, %v1929
        %v1946 = vsel %vm1907, 0.0, %v1930
        %v1947 = vsel %vm1907, 0.0, %v1931
        %v1948 = vmul.f32 %v1875, %v1940
        %v1949 = vmul.f32 %v1876, %v1941
        %v1950 = vmul.f32 %v1877, %v1942
        %v1951 = vmul.f32 %v1878, %v1943
        %v1952 = vmul.f32 %v1879, %v1944
        %v1953 = vmul.f32 %v1880, %v1945
        %v1954 = vmul.f32 %v1881, %v1946
        %v1955 = vmul.f32 %v1882, %v1947
        %v1956 = vadd.f32 %v1948, %v1867
        %v1957 = vadd.f32 %v1949, %v1868
        %v1958 = vadd.f32 %v1950, %v1869
        %v1959 = vadd.f32 %v1951, %v1870
        %v1960 = vadd.f32 %v1952, %v1871
        %v1961 = vadd.f32 %v1953, %v1872
        %v1962 = vadd.f32 %v1954, %v1873
        %v1963 = vadd.f32 %v1955, %v1874
        %v1964 = vmul.f32 %v1875, %v1908
        %v1965 = vmul.f32 %v1876, %v1909
        %v1966 = vmul.f32 %v1877, %v1910
        %v1967 = vmul.f32 %v1878, %v1911
        %v1968 = vmul.f32 %v1879, %v1912
        %v1969 = vmul.f32 %v1880, %v1913
        %v1970 = vmul.f32 %v1881, %v1914
        %v1971 = vmul.f32 %v1882, %v1915
        %v1980 = vrot.slane %v1964, 4
        %v1981 = vrot.slane %v1965, 4
        %v1982 = vrot.slane %v1966, 4
        %v1983 = vrot.slane %v1967, 4
        %v1984 = vrot.slane %v1968, 4
        %v1985 = vrot.slane %v1969, 4
        %v1986 = vrot.slane %v1970, 4
        %v1987 = vrot.slane %v1971, 4
        %vm1996 = vcmask 1043456
        %v1997 = vsel %vm1996, 1.0, %v1980
        %v1998 = vsel %vm1996, 1.0, %v1981
        %v1999 = vsel %vm1996, 1.0, %v1982
        %v2000 = vsel %vm1996, 1.0, %v1983
        %v2001 = vsel %vm1996, 1.0, %v1984
        %v2002 = vsel %vm1996, 1.0, %v1985
        %v2003 = vsel %vm1996, 1.0, %v1986
        %v2004 = vsel %vm1996, 1.0, %v1987
        %v2013 = vrot.slane %v1956, 4
        %v2014 = vrot.slane %v1957, 4
        %v2015 = vrot.slane %v1958, 4
        %v2016 = vrot.slane %v1959, 4
        %v2017 = vrot.slane %v1960, 4
        %v2018 = vrot.slane %v1961, 4
        %v2019 = vrot.slane %v1962, 4
        %v2020 = vrot.slane %v1963, 4
        %v2029 = vsel %vm1996, 0.0, %v2013
        %v2030 = vsel %vm1996, 0.0, %v2014
        %v2031 = vsel %vm1996, 0.0, %v2015
        %v2032 = vsel %vm1996, 0.0, %v2016
        %v2033 = vsel %vm1996, 0.0, %v2017
        %v2034 = vsel %vm1996, 0.0, %v2018
        %v2035 = vsel %vm1996, 0.0, %v2019
        %v2036 = vsel %vm1996, 0.0, %v2020
        %v2037 = vmul.f32 %v1964, %v2029
        %v2038 = vmul.f32 %v1965, %v2030
        %v2039 = vmul.f32 %v1966, %v2031
        %v2040 = vmul.f32 %v1967, %v2032
        %v2041 = vmul.f32 %v1968, %v2033
        %v2042 = vmul.f32 %v1969, %v2034
        %v2043 = vmul.f32 %v1970, %v2035
        %v2044 = vmul.f32 %v1971, %v2036
        %v2045 = vadd.f32 %v2037, %v1956
        %v2046 = vadd.f32 %v2038, %v1957
        %v2047 = vadd.f32 %v2039, %v1958
        %v2048 = vadd.f32 %v2040, %v1959
        %v2049 = vadd.f32 %v2041, %v1960
        %v2050 = vadd.f32 %v2042, %v1961
        %v2051 = vadd.f32 %v2043, %v1962
        %v2052 = vadd.f32 %v2044, %v1963
        %v2053 = vmul.f32 %v1964, %v1997
        %v2054 = vmul.f32 %v1965, %v1998
        %v2055 = vmul.f32 %v1966, %v1999
        %v2056 = vmul.f32 %v1967, %v2000
        %v2057 = vmul.f32 %v1968, %v2001
        %v2058 = vmul.f32 %v1969, %v2002
        %v2059 = vmul.f32 %v1970, %v2003
        %v2060 = vmul.f32 %v1971, %v2004
        %v2061 = vld [vmem:[#allocation3] sm:$0xff]
        %v2063 = vlaneseq
        %v2064 = vshrl.u32 %v2063, 7
        %v2065 = vsub.s32 0, %v2064
        %v2066 = vrot.slane %v2061, %v2065
        %v2067 = vlaneseq
        %v2068 = vshrl.u32 %v2067, 7
        %v2069 = vsub.s32 1, %v2068
        %v2070 = vrot.slane %v2061, %v2069
        %v2071 = vlaneseq
        %v2072 = vshrl.u32 %v2071, 7
        %v2073 = vsub.s32 2, %v2072
        %v2074 = vrot.slane %v2061, %v2073
        %v2075 = vlaneseq
        %v2076 = vshrl.u32 %v2075, 7
        %v2077 = vsub.s32 3, %v2076
        %v2078 = vrot.slane %v2061, %v2077
        %v2079 = vlaneseq
        %v2080 = vshrl.u32 %v2079, 7
        %v2081 = vsub.s32 4, %v2080
        %v2082 = vrot.slane %v2061, %v2081
        %v2083 = vlaneseq
        %v2084 = vshrl.u32 %v2083, 7
        %v2085 = vsub.s32 5, %v2084
        %v2086 = vrot.slane %v2061, %v2085
        %v2087 = vlaneseq
        %v2088 = vshrl.u32 %v2087, 7
        %v2089 = vsub.s32 6, %v2088
        %v2090 = vrot.slane %v2061, %v2089
        %v2091 = vlaneseq
        %v2092 = vshrl.u32 %v2091, 7
        %v2093 = vsub.s32 7, %v2092
        %v2094 = vrot.slane %v2061, %v2093
        %v2103 = vmul.f32 %v2053, %v2066
        %v2104 = vmul.f32 %v2054, %v2070
        %v2105 = vmul.f32 %v2055, %v2074
        %v2106 = vmul.f32 %v2056, %v2078
        %v2107 = vmul.f32 %v2057, %v2082
        %v2108 = vmul.f32 %v2058, %v2086
        %v2109 = vmul.f32 %v2059, %v2090
        %v2110 = vmul.f32 %v2060, %v2094
        %v2111 = vadd.f32 %v2103, %v2045
        %v2112 = vadd.f32 %v2104, %v2046
        %v2113 = vadd.f32 %v2105, %v2047
        %v2114 = vadd.f32 %v2106, %v2048
        %v2115 = vadd.f32 %v2107, %v2049
        %v2116 = vadd.f32 %v2108, %v2050
        %v2117 = vadd.f32 %v2109, %v2051
        %v2118 = vadd.f32 %v2110, %v2052
        %v2127 = vcombine.high %v2111, %v2112
        %v2128 = vcombine.high %v2113, %v2114
        %v2129 = vcombine.high %v2115, %v2116
        %v2130 = vcombine.high %v2117, %v2118
        %v2132 = vunpack.c.l.s4 1966171168
        %v2133 = vunpack.c.0.s8 %v2132
        %v2134 = vlaneseq
        %v2135 = vshrl.u32 %v2134, 7
        %v2136 = vsub.s32 %v2133, %v2135
        %v2137 = vrot.slane %v2127, %v2136
        %v2139 = vunpack.c.l.s4 1966171168
        %v2140 = vunpack.c.0.s8 %v2139
        %v2141 = vlaneseq
        %v2142 = vshrl.u32 %v2141, 7
        %v2143 = vsub.s32 %v2140, %v2142
        %v2144 = vrot.slane %v2128, %v2143
        %v2146 = vunpack.c.l.s4 1966171168
        %v2147 = vunpack.c.0.s8 %v2146
        %v2148 = vlaneseq
        %v2149 = vshrl.u32 %v2148, 7
        %v2150 = vsub.s32 %v2147, %v2149
        %v2151 = vrot.slane %v2129, %v2150
        %v2153 = vunpack.c.l.s4 1966171168
        %v2154 = vunpack.c.0.s8 %v2153
        %v2155 = vlaneseq
        %v2156 = vshrl.u32 %v2155, 7
        %v2157 = vsub.s32 %v2154, %v2156
        %v2158 = vrot.slane %v2130, %v2157
        %v2159 = vcombine.high %v2137, %v2144
        %v2160 = vcombine.high %v2151, %v2158
        %v2162 = vunpack.c.l.s4 1966171168
        %v2163 = vunpack.c.0.s8 %v2162
        %v2164 = vlaneseq
        %v2165 = vshrl.u32 %v2164, 7
        %v2166 = vsub.s32 %v2163, %v2165
        %v2167 = vrot.slane %v2159, %v2166
        %v2169 = vunpack.c.l.s4 1966171168
        %v2170 = vunpack.c.0.s8 %v2169
        %v2171 = vlaneseq
        %v2172 = vshrl.u32 %v2171, 7
        %v2173 = vsub.s32 %v2170, %v2172
        %v2174 = vrot.slane %v2160, %v2173
        %v2175 = vcombine.high %v2167, %v2174
        %2177 = vst [vmem:[#allocation3] sm:$0xff] %v2175
        %v2178 = vld [vmem:[#allocation13] sm:$0x1]
        %v2180 = vlaneseq
        %v2181 = vshrl.u32 %v2180, 7
        %v2182 = vsub.s32 0, %v2181
        %v2183 = vrot.slane %v2178, %v2182
        %v2185 = vmul.f32 %v678, %v2183
        %2186 = vset.pattern.permute.xlu0 80
        %2187 = vperm.xlu0 %2186, %v753
        %v2188 = vpop.permute.xlu0 %2187
        %v2190 = vmul.f32 %v2188, %v2111
        %v2191 = vadd.f32 %v2185, %v2190
        %2192 = vset.pattern.permute.xlu0 81
        %2193 = vperm.xlu0 %2192, %v753
        %v2194 = vpop.permute.xlu0 %2193
        %v2196 = vmul.f32 %v2194, %v2111
        %2198 = vrot.lane.b32.xlu0 %v2196, 64
        %v2199 = vpop.permute.xlu0 %2198
        %v2201 = vadd.f32 %v2191, %v2199
        %2202 = vset.pattern.permute.xlu0 82
        %2203 = vperm.xlu0 %2202, %v753
        %v2204 = vpop.permute.xlu0 %2203
        %v2206 = vmul.f32 %v2204, %v2112
        %v2207 = vadd.f32 %v2201, %v2206
        %2208 = vset.pattern.permute.xlu0 83
        %2209 = vperm.xlu0 %2208, %v753
        %v2210 = vpop.permute.xlu0 %2209
        %v2212 = vmul.f32 %v2210, %v2112
        %2214 = vrot.lane.b32.xlu0 %v2212, 64
        %v2215 = vpop.permute.xlu0 %2214
        %v2217 = vadd.f32 %v2207, %v2215
        %2218 = vset.pattern.permute.xlu0 84
        %2219 = vperm.xlu0 %2218, %v753
        %v2220 = vpop.permute.xlu0 %2219
        %v2222 = vmul.f32 %v2220, %v2113
        %v2223 = vadd.f32 %v2217, %v2222
        %2224 = vset.pattern.permute.xlu0 85
        %2225 = vperm.xlu0 %2224, %v753
        %v2226 = vpop.permute.xlu0 %2225
        %v2228 = vmul.f32 %v2226, %v2113
        %2230 = vrot.lane.b32.xlu0 %v2228, 64
        %v2231 = vpop.permute.xlu0 %2230
        %v2233 = vadd.f32 %v2223, %v2231
        %2234 = vset.pattern.permute.xlu0 86
        %2235 = vperm.xlu0 %2234, %v753
        %v2236 = vpop.permute.xlu0 %2235
        %v2238 = vmul.f32 %v2236, %v2114
        %v2239 = vadd.f32 %v2233, %v2238
        %2240 = vset.pattern.permute.xlu0 87
        %2241 = vperm.xlu0 %2240, %v753
        %v2242 = vpop.permute.xlu0 %2241
        %v2244 = vmul.f32 %v2242, %v2114
        %2246 = vrot.lane.b32.xlu0 %v2244, 64
        %v2247 = vpop.permute.xlu0 %2246
        %v2249 = vadd.f32 %v2239, %v2247
        %2250 = vset.pattern.permute.xlu0 88
        %2251 = vperm.xlu0 %2250, %v753
        %v2252 = vpop.permute.xlu0 %2251
        %v2254 = vmul.f32 %v2252, %v2115
        %v2255 = vadd.f32 %v2249, %v2254
        %2256 = vset.pattern.permute.xlu0 89
        %2257 = vperm.xlu0 %2256, %v753
        %v2258 = vpop.permute.xlu0 %2257
        %v2260 = vmul.f32 %v2258, %v2115
        %2262 = vrot.lane.b32.xlu0 %v2260, 64
        %v2263 = vpop.permute.xlu0 %2262
        %v2265 = vadd.f32 %v2255, %v2263
        %2266 = vset.pattern.permute.xlu0 90
        %2267 = vperm.xlu0 %2266, %v753
        %v2268 = vpop.permute.xlu0 %2267
        %v2270 = vmul.f32 %v2268, %v2116
        %v2271 = vadd.f32 %v2265, %v2270
        %2272 = vset.pattern.permute.xlu0 91
        %2273 = vperm.xlu0 %2272, %v753
        %v2274 = vpop.permute.xlu0 %2273
        %v2276 = vmul.f32 %v2274, %v2116
        %2278 = vrot.lane.b32.xlu0 %v2276, 64
        %v2279 = vpop.permute.xlu0 %2278
        %v2281 = vadd.f32 %v2271, %v2279
        %2282 = vset.pattern.permute.xlu0 92
        %2283 = vperm.xlu0 %2282, %v753
        %v2284 = vpop.permute.xlu0 %2283
        %v2286 = vmul.f32 %v2284, %v2117
        %v2287 = vadd.f32 %v2281, %v2286
        %2288 = vset.pattern.permute.xlu0 93
        %2289 = vperm.xlu0 %2288, %v753
        %v2290 = vpop.permute.xlu0 %2289
        %v2292 = vmul.f32 %v2290, %v2117
        %2294 = vrot.lane.b32.xlu0 %v2292, 64
        %v2295 = vpop.permute.xlu0 %2294
        %v2297 = vadd.f32 %v2287, %v2295
        %2298 = vset.pattern.permute.xlu0 94
        %2299 = vperm.xlu0 %2298, %v753
        %v2300 = vpop.permute.xlu0 %2299
        %v2302 = vmul.f32 %v2300, %v2118
        %v2303 = vadd.f32 %v2297, %v2302
        %2304 = vset.pattern.permute.xlu0 95
        %2305 = vperm.xlu0 %2304, %v753
        %v2306 = vpop.permute.xlu0 %2305
        %v2308 = vmul.f32 %v2306, %v2118
        %2310 = vrot.lane.b32.xlu0 %v2308, 64
        %v2311 = vpop.permute.xlu0 %2310
        %v2313 = vadd.f32 %v2303, %v2311
        %v2314 = vsub.f32 0.0, %v605
        %v2315 = vmul.f32 %v2314, 1.442695
        %v2316 = vpow.pop %v2315
        %v2317 = vadd.f32 %v2316, 1.0
        %v2318 = vrcp.pop %v2317
        %v2319 = vmul.f32 1.0, %v2318
        %v2320 = vmul.f32 %v605, %v2319
        %2322 = vrot.lane.b32.xlu0 %v2320, 64
        %v2323 = vpop.permute.xlu0 %2322
        %v2325 = vmul.f32 %v2313, %v2323
        %v2326 = vpack.c.bf16 %v2325, %v2325
        %v2327 = vld [vmem:[%s10] sm:$0xf]
        %v2328 = vld [vmem:[%s10 + $0x4] sm:$0xf]
        %v2329 = vld [vmem:[%s10 + $0x8] sm:$0xf]
        %v2330 = vld [vmem:[%s10 + $0xc] sm:$0xf]
        %v2331 = vld [vmem:[%s10 + $0x10] sm:$0xf]
        %v2332 = vld [vmem:[%s10 + $0x14] sm:$0xf]
        %v2333 = vld [vmem:[%s10 + $0x18] sm:$0xf]
        %v2334 = vld [vmem:[%s10 + $0x1c] sm:$0xf]
        %v2343 = vunpack.c.l.b16 %v2327
        %v2344 = vunpack.c.l.b16 %v2328
        %v2345 = vunpack.c.l.b16 %v2329
        %v2346 = vunpack.c.l.b16 %v2330
        %v2347 = vunpack.c.l.b16 %v2331
        %v2348 = vunpack.c.l.b16 %v2332
        %v2349 = vunpack.c.l.b16 %v2333
        %v2350 = vunpack.c.l.b16 %v2334
        %v2351 = vpack.c.b16 %v2344, %v2343
        %v2352 = vpack.c.b16 %v2346, %v2345
        %v2353 = vpack.c.b16 %v2348, %v2347
        %v2354 = vpack.c.b16 %v2350, %v2349
        %v2360 = vsel %vm714, %v2326, 0
        %2362 = vmatprep.subr.bf16.mxu0 0
        %2363 = vmatpush1.bf16.msra.mxu0 0
        %2364 = vmatprep.subr.bf16.mxu0 0
        %2365 = vmatpush1.bf16.msra.mxu0 0
        %2366 = vmatprep.subr.bf16.mxu0 0
        %2367 = vmatpush1.bf16.msra.mxu0 0
        %2368 = vmatprep.subr.bf16.mxu0 0
        %2369 = vmatpush1.bf16.msra.mxu0 0
        %2370 = vmatprep.subr.bf16.mxu0 0
        %2371 = vmatpush1.bf16.msra.mxu0 %v2354
        %2372 = vmatprep.subr.bf16.mxu0 0
        %2373 = vmatpush1.bf16.msra.mxu0 %v2353
        %2374 = vmatprep.subr.bf16.mxu0 0
        %2375 = vmatpush1.bf16.msra.mxu0 %v2352
        %2376 = vmatprep.subr.bf16.mxu0 0
        %2377 = vmatpush1.bf16.msra.mxu0 %v2351
        %2378 = vmatprep.subr.bf16.mxu0 0
        %2379 = vmatpush2.bf16.msra.mxu0 0
        %2380 = vmatprep.subr.bf16.mxu0 0
        %2381 = vmatpush2.bf16.msra.mxu0 0
        %2382 = vmatprep.subr.bf16.mxu0 0
        %2383 = vmatpush2.bf16.msra.mxu0 0
        %2384 = vmatprep.subr.bf16.mxu0 0
        %2385 = vmatpush2.bf16.msra.mxu0 0
        %2386 = vmatprep.subr.bf16.mxu0 0
        %2387 = vmatpush2.bf16.msra.mxu0 0
        %2388 = vmatprep.subr.bf16.mxu0 0
        %2389 = vmatpush2.bf16.msra.mxu0 0
        %2390 = vmatprep.subr.bf16.mxu0 0
        %2391 = vmatpush2.bf16.msra.mxu0 0
        %2392 = vmatprep.subr.bf16.mxu0 0
        %2393 = vmatpush2.bf16.msra.mxu0 0
        %2394 = vmatprep.mubr.bf16.mxu0 0
        %2395 = vmatmul.mubr.bf16.gmra.mxu0 %v2360
        %v2396 = vpop.f32.mrf.mxu0
        %v2397 = vadd.f32 0.0, %v2396
        %v2398 = vpop.f32.mrf.mxu0
        %v2399 = vpop.f32.mrf.mxu0
        %v2400 = vpop.f32.mrf.mxu0
        %2401 = vdwg.mxu0
        %v2402 = vadd.f32 %v548, %v2397
        %v2403 = vsel %vm566, %v2402, 0.0
        %2404 = vadd.xlane.f32.xlu0 %v2403
        %v2405 = vpop.xlane.xlu0 %2404
        %v2406 = vrcp.pop 32.0
        %v2407 = vmul.f32 %v2405, %v2406
        %v2408 = vsub.f32 %v2402, %v2407
        %v2409 = vmul.f32 %v2408, %v2408
        %v2410 = vsel %vm566, %v2409, 0.0
        %2411 = vadd.xlane.f32.xlu0 %v2410
        %v2412 = vpop.xlane.xlu0 %2411
        %v2413 = vmul.f32 %v2412, %v2406
        %v2414 = vadd.f32 %v2413, 1e-05
        %v2415 = vrsqrt.pop %v2414
        %v2416 = vmul.f32 %v2408, %v2415
        %v2417 = vld [vmem:[%s11] sm:$0x1]
        %v2419 = vlaneseq
        %v2420 = vshrl.u32 %v2419, 7
        %v2421 = vsub.s32 0, %v2420
        %v2422 = vrot.slane %v2417, %v2421
        %v2424 = vmul.f32 %v2416, %v2422
        %v2425 = vld [vmem:[%s12] sm:$0x1]
        %v2427 = vlaneseq
        %v2428 = vshrl.u32 %v2427, 7
        %v2429 = vsub.s32 0, %v2428
        %v2430 = vrot.slane %v2425, %v2429
        %v2432 = vadd.f32 %v2424, %v2430
        %2433 = vst.msk [vmem:[%s532] sm:$0xff] %vm566, %v2432
        %s2434 = sand.u32 %s333, 1
        %s2435 = scalar_lea.sflag [#allocation6], %s2434
        %s2436 = sand.u32 %s333, 1
        %s2437 = smul.addr %s2436, 8
        %s2438 = scalar_lea.vmem [#allocation15], %s2437
        // Predicated region
        $region101: #{tpu_custom_call.1} parent=71 // pred_check
          %p2439 = pneg %p343
        $region102: #{tpu_custom_call.1} parent=71 // pred_check_branch
          %2441 = sbr.rel (%p2439) target = $region104
        $region103: #{tpu_custom_call.1} parent=71 // pred_region
          %s2442 = sadd.s32 %s35, %s36
          %s2444 = ssub.s32 128, 128
          %2445 = vsyncadd %s2435, %s2444
          %s2446 = smul.addr %s2442, 128
          %s2447 = scalar_lea.hbm %s13, %s2446
          %s2449 = sshll.u32 %s2438, 4
          %s2450 = int_to_ptr.vmem [resolvable:$true] %s2449
          %2452 = dma.vmem_to_hbm [thread:$0]  %s2450, 128, %s2447, %s2435
        $region104: #{tpu_custom_call.1} parent=71 // pred_fallthru
          _
      $region72: #{tpu_custom_call.1} parent=5 // pred_fallthru
        _
      %p2453 = scmp.le.s32.totalorder 2, %s26
      // Predicated region
      $region105: #{tpu_custom_call.1} parent=5 // pred_check
        %p2454 = pneg %p2453
      $region106: #{tpu_custom_call.1} parent=5 // pred_check_branch
        %2456 = sbr.rel (%p2454) target = $region108
      $region107: #{tpu_custom_call.1} parent=5 // pred_region
        %s2457 = ssub.s32 %s26, 2
        // Predicated region
        $region109: #{tpu_custom_call.1} parent=107 // pred_check
          %p2458 = pneg %p349
        $region110: #{tpu_custom_call.1} parent=107 // pred_check_branch
          %2460 = sbr.rel (%p2458) target = $region112
        $region111: #{tpu_custom_call.1} parent=107 // pred_region
          %s2461 = sand.u32 %s334, 1
          %s2462 = scalar_lea.sflag [#allocation6], %s2461
          %s2463 = sand.u32 %s334, 1
          %s2464 = smul.addr %s2463, 8
          %s2465 = scalar_lea.vmem [#allocation15], %s2464
          %2466 = dma.done %s2462, 128
        $region112: #{tpu_custom_call.1} parent=107 // pred_fallthru
          _
      $region108: #{tpu_custom_call.1} parent=5 // pred_fallthru
        _
    $region6: #{tpu_custom_call.1} parent=1 // loop_footer
      %s30 = sadd.s32 1, %s26
    $region7: #{tpu_custom_call.1} parent=1 // loop_footer_branch
      %25 = sbr.rel target = $region3
    $region8: #{tpu_custom_call.1} parent=1 // loop_exit
      _
    %2467 = vsyncpa [#allocation5], 1
    %s2468 = scalar_lea.sflag [#allocation5], 1
    %2469 = vsyncpa %s2468, 1
    %2470 = vsyncpa [#allocation8], 1
    %2471 = vsyncpa [#allocation11], 1
    %2472 = vsyncpa [#allocation14], 1
    %2473 = vsyncpa [#allocation6], 1
    %s2474 = scalar_lea.sflag [#allocation6], 1
    %2475 = vsyncpa %s2474, 1

</llo_original>
